<compile_context>
chip_gen: v7x
topology: tpu7x:2x2x1
jax: 0.10.0
libtpu: 0.0.40
codegen_flags: <defaults>
</compile_context>

<pallas_src>
import jax
import jax.numpy as jnp
from jax.experimental import pallas as pl
from jax.experimental.pallas import tpu as pltpu

EPS = 1e-5  # nn.LayerNorm default


def _gelu(x):
    # tanh-approximate GELU (EUP-friendly). <~1e-3 deviation from torch's exact erf GELU.
    c = 0.7978845608028654  # sqrt(2/pi)
    return 0.5 * x * (1.0 + jnp.tanh(c * (x + 0.044715 * x * x * x)))


# ----------------------------------------------------------------------------- kernel

def names_generator_seq_kernel(
    cat_ref,    # [Bn, C]           one batch block, fixed over the sequence
    hid0_ref,   # [Bn, H]           initial hidden for this batch block
    inp_ref,    # [T, Bn, V]        full input sequence, resident
    w1_ref,     # [D1, H+V]         LN-folded [i2h | i2o] weights (single, un-split)
    b1_ref,     # [1, H+V]          LN-folded [i2h | i2o] bias (f32)
    w2_ref,     # [H+V, OUT_W - H]  LN-folded o2o weights, zero-padded to lane-dense width
    b2_ref,     # [1, OUT_W - H]
    out_ref,    # [T, Bn, OUT_W]    lane-dense output slab: [hidden' | output | 0-pad]
):
    T = inp_ref.shape[0]
    H = hid0_ref.shape[-1]
    D1 = cat_ref.shape[-1] + inp_ref.shape[-1] + H   # i2h / i2o input width
    D2 = w2_ref.shape[0]                             # o2o input width == H + V
    mxu_dt = w1_ref.dtype

    # Hoisted once (resident in vregs across the whole unrolled time loop).
    c = cat_ref[...]
    w1 = w1_ref[...]
    b1 = b1_ref[...]
    w2 = w2_ref[...]
    b2 = b2_ref[...]
    inv_d1 = 1.0 / D1
    inv_d2 = 1.0 / D2

    def step(t, h):
        # ---- virtual concat(category, input, hidden): two lane shifts, stays in vregs ----
        x = jnp.concatenate([c, inp_ref[t], h], axis=-1)          # [Bn, D1] f32

        # ---- single LayerNorm pass (gain/bias folded into w1/b1) ----
        mu = jnp.sum(x, -1, keepdims=True) * inv_d1
        xc = x - mu
        var = jnp.sum(xc * xc, -1, keepdims=True) * inv_d1
        z = xc * jax.lax.rsqrt(var + EPS)

        # ---- ONE matmul for i2h + i2o (output split [hidden' | i2o out]), f32 accumulate ----
        pre = jnp.dot(z.astype(mxu_dt), w1, preferred_element_type=jnp.float32) + b1
        hv = _gelu(pre)                                           # [Bn, H+V]; Dropout = identity
        h_new = hv[:, :H]                                         # recurrent carry

        # ---- o2o on cat(hidden', output) == hv, LN gain/bias folded into w2/b2 ----
        mu2 = jnp.sum(hv, -1, keepdims=True) * inv_d2
        hvc = hv - mu2
        var2 = jnp.sum(hvc * hvc, -1, keepdims=True) * inv_d2
        z2 = hvc * jax.lax.rsqrt(var2 + EPS)
        y = jnp.dot(z2.astype(mxu_dt), w2, preferred_element_type=jnp.float32) + b2
        out_pad = _gelu(y)                       # [Bn, OUT_W - H]; pad cols are exactly gelu(0)=0

        # ---- one lane-dense full-width store per step: [hidden' | output | 0-pad] ----
        out_ref[t] = jnp.concatenate([h_new, out_pad], axis=-1)
        return h_new

    jax.lax.fori_loop(0, T, step, hid0_ref[...], unroll=True)


# ----------------------------------------------------------------------------- host side

def init_params(key, num_classes, num_vocab, hidden_size):
    C, V, H = num_classes, num_vocab, hidden_size
    D1 = C + V + H          # i2h / i2o input size
    D2 = H + V              # o2o input size
    ks = jax.random.split(key, 12)

    def linear(kw, kb, din, dout):
        bound = 1.0 / jnp.sqrt(din)
        w = jax.random.uniform(kw, (din, dout), jnp.float32, -bound, bound)
        b = jax.random.uniform(kb, (dout,), jnp.float32, -bound, bound)
        return w, b

    def ln(kg, kb, d):
        g = 1.0 + 0.1 * jax.random.normal(kg, (d,), jnp.float32)
        b = 0.1 * jax.random.normal(kb, (d,), jnp.float32)
        return g, b

    p = {}
    p["ln_i2h_g"], p["ln_i2h_b"] = ln(ks[0], ks[1], D1)
    p["w_i2h"], p["b_i2h"] = linear(ks[2], ks[3], D1, H)
    p["ln_i2o_g"], p["ln_i2o_b"] = ln(ks[4], ks[5], D1)
    p["w_i2o"], p["b_i2o"] = linear(ks[6], ks[7], D1, V)
    p["ln_o2o_g"], p["ln_o2o_b"] = ln(ks[8], ks[9], D2)
    p["w_o2o"], p["b_o2o"] = linear(ks[10], ks[11], D2, V)
    return p


def _fold_params(params, C, V, H, out_w, dtype):
    """Fold LayerNorm gain/bias into the following Linear (host side, done once):
         LN(x) @ W + b == ((x - mu) * inv) @ (g[:, None] * W) + (b_ln @ W + b)
    i2h and i2o (same input) are concatenated along the output axis into ONE weight w1."""
    w_i2h = params["ln_i2h_g"][:, None] * params["w_i2h"]             # [D1, H]
    b_i2h = params["ln_i2h_b"] @ params["w_i2h"] + params["b_i2h"]    # [H]
    w_i2o = params["ln_i2o_g"][:, None] * params["w_i2o"]             # [D1, V]
    b_i2o = params["ln_i2o_b"] @ params["w_i2o"] + params["b_i2o"]    # [V]
    w1 = jnp.concatenate([w_i2h, w_i2o], axis=1)                      # [D1, H+V]
    b1 = jnp.concatenate([b_i2h, b_i2o])[None, :]                     # [1, H+V]

    w2 = params["ln_o2o_g"][:, None] * params["w_o2o"]                # [H+V, V]
    b2 = params["ln_o2o_b"] @ params["w_o2o"] + params["b_o2o"]       # [V]
    # Zero-pad o2o output width to (out_w - H) so the kernel's output store is lane-dense.
    # (Pad columns MUST stay exactly zero so gelu(0) == 0 in the padded output lanes.)
    pad = out_w - H - V
    w2 = jnp.pad(w2, ((0, 0), (0, pad)))
    b2 = jnp.pad(b2, (0, pad))[None, :]

    return dict(
        w1=w1.astype(dtype),
        b1=b1.astype(jnp.float32),
        w2=w2.astype(dtype),
        b2=b2.astype(jnp.float32),
    )


def names_generator_sequence(category, inp_seq, hidden0, params, *, param_dtype=jnp.bfloat16):
    """Run T recurrent steps in ONE pallas_call (in-kernel unrolled time loop).

    category: [N, C] (fixed over the sequence), inp_seq: [T, N, V], hidden0: [N, H]
    returns (out_seq [T, N, V], hid_seq [T, N, H])
    """
    T, N, V = inp_seq.shape
    C = category.shape[-1]
    H = hidden0.shape[-1]
    out_w = max(128, -(-(V + H) // 128) * 128)        # lane-dense output slab width

    # ---- Batch padding / blocking: pad N to >= 8 sublanes; block batch for v7x's 2nd TC. ----
    block_n = 256
    n_pad = max(8, -(-N // 8) * 8)
    if n_pad > block_n:
        n_pad = -(-n_pad // block_n) * block_n
    else:
        block_n = n_pad
    nb = n_pad // block_n

    pad_rows = n_pad - N
    if pad_rows:
        category = jnp.pad(category, ((0, pad_rows), (0, 0)))
        inp_seq = jnp.pad(inp_seq, ((0, 0), (0, pad_rows), (0, 0)))
        hidden0 = jnp.pad(hidden0, ((0, pad_rows), (0, 0)))

    fp = _fold_params(params, C, V, H, out_w, param_dtype)

    def resident(shape):
        # Constant index_map -> block stays resident in VMEM across all batch-block grid steps.
        return pl.BlockSpec(shape, lambda i, _n=len(shape): (0,) * _n)

    grid_spec = pltpu.PrefetchScalarGridSpec(
        num_scalar_prefetch=0,
        grid=(nb,),                                               # batch blocks only; time is in-kernel
        in_specs=[
            pl.BlockSpec((block_n, C), lambda i: (i, 0)),         # category block
            pl.BlockSpec((block_n, H), lambda i: (i, 0)),         # initial hidden block
            pl.BlockSpec((T, block_n, V), lambda i: (0, i, 0)),   # full input sequence, resident
            resident(fp["w1"].shape),
            resident(fp["b1"].shape),
            resident(fp["w2"].shape),
            resident(fp["b2"].shape),
        ],
        out_specs=pl.BlockSpec((T, block_n, out_w), lambda i: (0, i, 0)),
    )

    # NOTE: all operands are tiny here (<100 KB); if H/V are scaled up, set
    # pltpu.CompilerParams(vmem_limit_bytes=...) explicitly (v7x has 64 MiB VMEM vs 128 MiB
    # on v5e/v6e) and block the H+V output dimension of w1/w2.
    slab = pl.pallas_call(
        names_generator_seq_kernel,
        out_shape=jax.ShapeDtypeStruct((T, n_pad, out_w), jnp.float32),
        grid_spec=grid_spec,
        compiler_params=pltpu.CompilerParams(
            dimension_semantics=("parallel",)),   # batch blocks are independent (v7x: 2 TCs)
    )(
        category.astype(jnp.float32),
        hidden0.astype(jnp.float32),
        inp_seq.astype(jnp.float32),
        fp["w1"], fp["b1"], fp["w2"], fp["b2"],
    )
    hid_seq = slab[:, :N, :H]
    out_seq = slab[:, :N, H:H + V]
    return out_seq, hid_seq


def names_generator_forward(category, inp, hidden, params, **kw):
    """Single step, matching NamesGenerator.forward: returns (output [N, V], hidden' [N, H])."""
    out_seq, hid_seq = names_generator_sequence(category, inp[None], hidden, params, **kw)
    return out_seq[0], hid_seq[0]


# ----------------------------------------------------------------------------- pure-JAX reference

def _ref_mlp(x, g, b_ln, w, b):
    mu = jnp.mean(x, -1, keepdims=True)
    var = jnp.mean((x - mu) ** 2, -1, keepdims=True)
    z = (x - mu) / jnp.sqrt(var + EPS) * g + b_ln
    return _gelu(z @ w + b)


def reference_sequence(category, inp_seq, hidden, params):
    outs, hids = [], []
    for t in range(inp_seq.shape[0]):
        x = jnp.concatenate([category, inp_seq[t], hidden], -1)
        h = _ref_mlp(x, params["ln_i2h_g"], params["ln_i2h_b"], params["w_i2h"], params["b_i2h"])
        o = _ref_mlp(x, params["ln_i2o_g"], params["ln_i2o_b"], params["w_i2o"], params["b_i2o"])
        o = _ref_mlp(jnp.concatenate([h, o], -1),
                     params["ln_o2o_g"], params["ln_o2o_b"], params["w_o2o"], params["b_o2o"])
        hidden = h
        outs.append(o)
        hids.append(h)
    return jnp.stack(outs), jnp.stack(hids)


# ----------------------------------------------------------------------------- main

if __name__ == "__main__":
    key = jax.random.PRNGKey(0)
    N, C, V, H, T = 2, 4, 8, 32, 8   # batch, num_classes, num_vocab, hidden_size, seq length

    k_cat, k_inp, k_par = jax.random.split(key, 3)
    category = jax.nn.one_hot(jax.random.randint(k_cat, (N,), 0, C), C).astype(jnp.float32)
    inp_seq = jax.nn.one_hot(jax.random.randint(k_inp, (T, N), 0, V), V).astype(jnp.float32)
    hidden0 = jnp.zeros((N, H), jnp.float32)
    params = init_params(k_par, C, V, H)

    ref_out, ref_hid = reference_sequence(category, inp_seq, hidden0, params)

    # Fused multi-step run with f32 weights, checked against the pure-JAX reference
    # (same tanh-GELU, so this validates the LN/concat/weight-folding fusion math).
    out_seq, hid_seq = names_generator_sequence(category, inp_seq, hidden0, params,
                                                param_dtype=jnp.float32)
    jax.block_until_ready((out_seq, hid_seq))
    assert out_seq.shape == (T, N, V) and hid_seq.shape == (T, N, H)
    assert bool(jnp.allclose(out_seq, ref_out, atol=2e-2, rtol=2e-2))
    assert bool(jnp.allclose(hid_seq, ref_hid, atol=2e-2, rtol=2e-2))

    # Default bf16-weight run (v6e/v7x recommendation): validated against the f32 reference
    # with a loose bound (bf16 weight rounding compounds over T but LayerNorm bounds it).
    out_bf, hid_bf = names_generator_sequence(category, inp_seq, hidden0, params)
    jax.block_until_ready((out_bf, hid_bf))
    assert bool(jnp.all(jnp.isfinite(out_bf))) and bool(jnp.all(jnp.isfinite(hid_bf)))
    assert float(jnp.max(jnp.abs(out_bf - ref_out))) < 0.25

    # Single-step call matching the PyTorch module's forward signature.
    out1, hid1 = names_generator_forward(category, inp_seq[0], hidden0, params)
    jax.block_until_ready((out1, hid1))
    assert out1.shape == (N, V) and out1.dtype == jnp.float32
    assert hid1.shape == (N, H) and hid1.dtype == jnp.float32
    assert bool(jnp.allclose(out1, ref_out[0], atol=5e-2))

    print("KERNEL_OK")
</pallas_src>

<mosaic_0001>
module attributes {stable_mosaic.version = 11 : i64} {
  func.func @names_generator_seq_kernel(%arg0: i32, %arg1: memref<8x4xf32, #tpu.memory_space<vmem>>, %arg2: memref<8x32xf32, #tpu.memory_space<vmem>>, %arg3: memref<8x8x8xf32, #tpu.memory_space<vmem>>, %arg4: memref<44x40xf32, #tpu.memory_space<vmem>>, %arg5: memref<1x40xf32, #tpu.memory_space<vmem>>, %arg6: memref<40x96xf32, #tpu.memory_space<vmem>>, %arg7: memref<1x96xf32, #tpu.memory_space<vmem>>, %arg8: memref<8x8x128xf32, #tpu.memory_space<vmem>>) attributes {dimension_semantics = [#tpu.dimension_semantics<parallel>], iteration_bounds = array<i64: 1>, scalar_prefetch = 0 : i64, scratch_operands = 0 : i64, tpu.core_type = #tpu.core_type<tc>, window_params = [{transform_indices = @transform_0, window_bounds = array<i64: 8, 4>}, {transform_indices = @transform_1, window_bounds = array<i64: 8, 32>}, {transform_indices = @transform_2, window_bounds = array<i64: 8, 8, 8>}, {pipeline_mode = #tpu.pipeline_mode<synchronous>, transform_indices = @transform_3, window_bounds = array<i64: 44, 40>}, {pipeline_mode = #tpu.pipeline_mode<synchronous>, transform_indices = @transform_4, window_bounds = array<i64: 1, 40>}, {pipeline_mode = #tpu.pipeline_mode<synchronous>, transform_indices = @transform_5, window_bounds = array<i64: 40, 96>}, {pipeline_mode = #tpu.pipeline_mode<synchronous>, transform_indices = @transform_6, window_bounds = array<i64: 1, 96>}, {transform_indices = @transform_7, window_bounds = array<i64: 8, 8, 128>}]} {
    %c0 = arith.constant 0 : index
    %c0_0 = arith.constant 0 : index
    %0 = vector.load %arg1[%c0, %c0_0] : memref<8x4xf32, #tpu.memory_space<vmem>>, vector<8x4xf32>
    %c0_1 = arith.constant 0 : index
    %c0_2 = arith.constant 0 : index
    %1 = vector.load %arg4[%c0_1, %c0_2] : memref<44x40xf32, #tpu.memory_space<vmem>>, vector<44x40xf32>
    %c0_3 = arith.constant 0 : index
    %c0_4 = arith.constant 0 : index
    %2 = vector.load %arg5[%c0_3, %c0_4] : memref<1x40xf32, #tpu.memory_space<vmem>>, vector<1x40xf32>
    %c0_5 = arith.constant 0 : index
    %c0_6 = arith.constant 0 : index
    %3 = vector.load %arg6[%c0_5, %c0_6] : memref<40x96xf32, #tpu.memory_space<vmem>>, vector<40x96xf32>
    %c0_7 = arith.constant 0 : index
    %c0_8 = arith.constant 0 : index
    %4 = vector.load %arg7[%c0_7, %c0_8] : memref<1x96xf32, #tpu.memory_space<vmem>>, vector<1x96xf32>
    %c0_9 = arith.constant 0 : index
    %c0_10 = arith.constant 0 : index
    %5 = vector.load %arg2[%c0_9, %c0_10] : memref<8x32xf32, #tpu.memory_space<vmem>>, vector<8x32xf32>
    %c0_i32 = arith.constant 0 : i32
    %6 = arith.index_cast %c0_i32 : i32 to index
    %c0_11 = arith.constant 0 : index
    %c0_12 = arith.constant 0 : index
    %7 = vector.load %arg3[%6, %c0_11, %c0_12] : memref<8x8x8xf32, #tpu.memory_space<vmem>>, vector<1x8x8xf32>
    %8 = vector.shape_cast %7 : vector<1x8x8xf32> to vector<8x8xf32>
    %9 = tpu.concatenate %0, %8, %5 in 1 : vector<8x4xf32>, vector<8x8xf32>, vector<8x32xf32> -> vector<8x44xf32>
    %cst = arith.constant dense<0.000000e+00> : vector<8xf32>
    %10 = vector.multi_reduction <add>, %9, %cst [1] : vector<8x44xf32> to vector<8xf32>
    %11 = vector.shape_cast %10 : vector<8xf32> to vector<8x1xf32>
    %cst_13 = arith.constant 0.0227272734 : f32
    %12 = vector.broadcast %cst_13 : f32 to vector<8x1xf32>
    %13 = arith.mulf %11, %12 : vector<8x1xf32>
    %14 = vector.broadcast %13 : vector<8x1xf32> to vector<8x44xf32>
    %15 = arith.subf %9, %14 : vector<8x44xf32>
    %16 = arith.mulf %15, %15 : vector<8x44xf32>
    %cst_14 = arith.constant dense<0.000000e+00> : vector<8xf32>
    %17 = vector.multi_reduction <add>, %16, %cst_14 [1] : vector<8x44xf32> to vector<8xf32>
    %18 = vector.shape_cast %17 : vector<8xf32> to vector<8x1xf32>
    %cst_15 = arith.constant 0.0227272734 : f32
    %19 = vector.broadcast %cst_15 : f32 to vector<8x1xf32>
    %20 = arith.mulf %18, %19 : vector<8x1xf32>
    %cst_16 = arith.constant 9.99999974E-6 : f32
    %21 = vector.broadcast %cst_16 : f32 to vector<8x1xf32>
    %22 = arith.addf %20, %21 : vector<8x1xf32>
    %23 = math.rsqrt %22 : vector<8x1xf32>
    %24 = vector.broadcast %23 : vector<8x1xf32> to vector<8x44xf32>
    %25 = arith.mulf %15, %24 : vector<8x44xf32>
    %cst_17 = arith.constant dense<0.000000e+00> : vector<8x40xf32>
    %26 = tpu.matmul %25, %1, %cst_17 {dimension_numbers = #tpu.dot_dimension_numbers<[1], [0], [0], [1], [0, 0, 1, 1], [], []>} : vector<8x44xf32>, vector<44x40xf32>, vector<8x40xf32> -> vector<8x40xf32>
    %27 = vector.broadcast %2 : vector<1x40xf32> to vector<8x40xf32>
    %28 = arith.addf %26, %27 : vector<8x40xf32>
    %cst_18 = arith.constant 5.000000e-01 : f32
    %29 = vector.broadcast %cst_18 : f32 to vector<8x40xf32>
    %30 = arith.mulf %29, %28 : vector<8x40xf32>
    %cst_19 = arith.constant 4.471500e-02 : f32
    %31 = vector.broadcast %cst_19 : f32 to vector<8x40xf32>
    %32 = arith.mulf %31, %28 : vector<8x40xf32>
    %33 = arith.mulf %32, %28 : vector<8x40xf32>
    %34 = arith.mulf %33, %28 : vector<8x40xf32>
    %35 = arith.addf %28, %34 : vector<8x40xf32>
    %cst_20 = arith.constant 0.797884583 : f32
    %36 = vector.broadcast %cst_20 : f32 to vector<8x40xf32>
    %37 = arith.mulf %36, %35 : vector<8x40xf32>
    %38 = math.tanh %37 : vector<8x40xf32>
    %cst_21 = arith.constant 1.000000e+00 : f32
    %39 = vector.broadcast %cst_21 : f32 to vector<8x40xf32>
    %40 = arith.addf %39, %38 : vector<8x40xf32>
    %41 = arith.mulf %30, %40 : vector<8x40xf32>
    %42 = vector.extract_strided_slice %41 {offsets = [0, 0], sizes = [8, 32], strides = [1, 1]} : vector<8x40xf32> to vector<8x32xf32>
    %cst_22 = arith.constant dense<0.000000e+00> : vector<8xf32>
    %43 = vector.multi_reduction <add>, %41, %cst_22 [1] : vector<8x40xf32> to vector<8xf32>
    %44 = vector.shape_cast %43 : vector<8xf32> to vector<8x1xf32>
    %cst_23 = arith.constant 2.500000e-02 : f32
    %45 = vector.broadcast %cst_23 : f32 to vector<8x1xf32>
    %46 = arith.mulf %44, %45 : vector<8x1xf32>
    %47 = vector.broadcast %46 : vector<8x1xf32> to vector<8x40xf32>
    %48 = arith.subf %41, %47 : vector<8x40xf32>
    %49 = arith.mulf %48, %48 : vector<8x40xf32>
    %cst_24 = arith.constant dense<0.000000e+00> : vector<8xf32>
    %50 = vector.multi_reduction <add>, %49, %cst_24 [1] : vector<8x40xf32> to vector<8xf32>
    %51 = vector.shape_cast %50 : vector<8xf32> to vector<8x1xf32>
    %cst_25 = arith.constant 2.500000e-02 : f32
    %52 = vector.broadcast %cst_25 : f32 to vector<8x1xf32>
    %53 = arith.mulf %51, %52 : vector<8x1xf32>
    %cst_26 = arith.constant 9.99999974E-6 : f32
    %54 = vector.broadcast %cst_26 : f32 to vector<8x1xf32>
    %55 = arith.addf %53, %54 : vector<8x1xf32>
    %56 = math.rsqrt %55 : vector<8x1xf32>
    %57 = vector.broadcast %56 : vector<8x1xf32> to vector<8x40xf32>
    %58 = arith.mulf %48, %57 : vector<8x40xf32>
    %cst_27 = arith.constant dense<0.000000e+00> : vector<8x96xf32>
    %59 = tpu.matmul %58, %3, %cst_27 {dimension_numbers = #tpu.dot_dimension_numbers<[1], [0], [0], [1], [0, 0, 1, 1], [], []>} : vector<8x40xf32>, vector<40x96xf32>, vector<8x96xf32> -> vector<8x96xf32>
    %60 = vector.broadcast %4 : vector<1x96xf32> to vector<8x96xf32>
    %61 = arith.addf %59, %60 : vector<8x96xf32>
    %cst_28 = arith.constant 5.000000e-01 : f32
    %62 = vector.broadcast %cst_28 : f32 to vector<8x96xf32>
    %63 = arith.mulf %62, %61 : vector<8x96xf32>
    %cst_29 = arith.constant 4.471500e-02 : f32
    %64 = vector.broadcast %cst_29 : f32 to vector<8x96xf32>
    %65 = arith.mulf %64, %61 : vector<8x96xf32>
    %66 = arith.mulf %65, %61 : vector<8x96xf32>
    %67 = arith.mulf %66, %61 : vector<8x96xf32>
    %68 = arith.addf %61, %67 : vector<8x96xf32>
    %cst_30 = arith.constant 0.797884583 : f32
    %69 = vector.broadcast %cst_30 : f32 to vector<8x96xf32>
    %70 = arith.mulf %69, %68 : vector<8x96xf32>
    %71 = math.tanh %70 : vector<8x96xf32>
    %cst_31 = arith.constant 1.000000e+00 : f32
    %72 = vector.broadcast %cst_31 : f32 to vector<8x96xf32>
    %73 = arith.addf %72, %71 : vector<8x96xf32>
    %74 = arith.mulf %63, %73 : vector<8x96xf32>
    %75 = tpu.concatenate %42, %74 in 1 : vector<8x32xf32>, vector<8x96xf32> -> vector<8x128xf32>
    %76 = arith.index_cast %c0_i32 : i32 to index
    %c0_32 = arith.constant 0 : index
    %c0_33 = arith.constant 0 : index
    %77 = vector.load %arg8[%76, %c0_32, %c0_33] : memref<8x8x128xf32, #tpu.memory_space<vmem>>, vector<1x8x128xf32>
    %78 = vector.shape_cast %77 : vector<1x8x128xf32> to vector<8x128xf32>
    %79 = vector.shape_cast %75 : vector<8x128xf32> to vector<1x8x128xf32>
    tpu.vector_store %arg8[%76, %c0_32, %c0_33], %79 {strides = array<i32>} : memref<8x8x128xf32, #tpu.memory_space<vmem>>, vector<1x8x128xf32>,
    %c1_i32 = arith.constant 1 : i32
    %80 = arith.index_cast %c1_i32 : i32 to index
    %c0_34 = arith.constant 0 : index
    %c0_35 = arith.constant 0 : index
    %81 = vector.load %arg3[%80, %c0_34, %c0_35] : memref<8x8x8xf32, #tpu.memory_space<vmem>>, vector<1x8x8xf32>
    %82 = vector.shape_cast %81 : vector<1x8x8xf32> to vector<8x8xf32>
    %83 = tpu.concatenate %0, %82, %42 in 1 : vector<8x4xf32>, vector<8x8xf32>, vector<8x32xf32> -> vector<8x44xf32>
    %cst_36 = arith.constant dense<0.000000e+00> : vector<8xf32>
    %84 = vector.multi_reduction <add>, %83, %cst_36 [1] : vector<8x44xf32> to vector<8xf32>
    %85 = vector.shape_cast %84 : vector<8xf32> to vector<8x1xf32>
    %cst_37 = arith.constant 0.0227272734 : f32
    %86 = vector.broadcast %cst_37 : f32 to vector<8x1xf32>
    %87 = arith.mulf %85, %86 : vector<8x1xf32>
    %88 = vector.broadcast %87 : vector<8x1xf32> to vector<8x44xf32>
    %89 = arith.subf %83, %88 : vector<8x44xf32>
    %90 = arith.mulf %89, %89 : vector<8x44xf32>
    %cst_38 = arith.constant dense<0.000000e+00> : vector<8xf32>
    %91 = vector.multi_reduction <add>, %90, %cst_38 [1] : vector<8x44xf32> to vector<8xf32>
    %92 = vector.shape_cast %91 : vector<8xf32> to vector<8x1xf32>
    %cst_39 = arith.constant 0.0227272734 : f32
    %93 = vector.broadcast %cst_39 : f32 to vector<8x1xf32>
    %94 = arith.mulf %92, %93 : vector<8x1xf32>
    %cst_40 = arith.constant 9.99999974E-6 : f32
    %95 = vector.broadcast %cst_40 : f32 to vector<8x1xf32>
    %96 = arith.addf %94, %95 : vector<8x1xf32>
    %97 = math.rsqrt %96 : vector<8x1xf32>
    %98 = vector.broadcast %97 : vector<8x1xf32> to vector<8x44xf32>
    %99 = arith.mulf %89, %98 : vector<8x44xf32>
    %cst_41 = arith.constant dense<0.000000e+00> : vector<8x40xf32>
    %100 = tpu.matmul %99, %1, %cst_41 {dimension_numbers = #tpu.dot_dimension_numbers<[1], [0], [0], [1], [0, 0, 1, 1], [], []>} : vector<8x44xf32>, vector<44x40xf32>, vector<8x40xf32> -> vector<8x40xf32>
    %101 = vector.broadcast %2 : vector<1x40xf32> to vector<8x40xf32>
    %102 = arith.addf %100, %101 : vector<8x40xf32>
    %cst_42 = arith.constant 5.000000e-01 : f32
    %103 = vector.broadcast %cst_42 : f32 to vector<8x40xf32>
    %104 = arith.mulf %103, %102 : vector<8x40xf32>
    %cst_43 = arith.constant 4.471500e-02 : f32
    %105 = vector.broadcast %cst_43 : f32 to vector<8x40xf32>
    %106 = arith.mulf %105, %102 : vector<8x40xf32>
    %107 = arith.mulf %106, %102 : vector<8x40xf32>
    %108 = arith.mulf %107, %102 : vector<8x40xf32>
    %109 = arith.addf %102, %108 : vector<8x40xf32>
    %cst_44 = arith.constant 0.797884583 : f32
    %110 = vector.broadcast %cst_44 : f32 to vector<8x40xf32>
    %111 = arith.mulf %110, %109 : vector<8x40xf32>
    %112 = math.tanh %111 : vector<8x40xf32>
    %cst_45 = arith.constant 1.000000e+00 : f32
    %113 = vector.broadcast %cst_45 : f32 to vector<8x40xf32>
    %114 = arith.addf %113, %112 : vector<8x40xf32>
    %115 = arith.mulf %104, %114 : vector<8x40xf32>
    %116 = vector.extract_strided_slice %115 {offsets = [0, 0], sizes = [8, 32], strides = [1, 1]} : vector<8x40xf32> to vector<8x32xf32>
    %cst_46 = arith.constant dense<0.000000e+00> : vector<8xf32>
    %117 = vector.multi_reduction <add>, %115, %cst_46 [1] : vector<8x40xf32> to vector<8xf32>
    %118 = vector.shape_cast %117 : vector<8xf32> to vector<8x1xf32>
    %cst_47 = arith.constant 2.500000e-02 : f32
    %119 = vector.broadcast %cst_47 : f32 to vector<8x1xf32>
    %120 = arith.mulf %118, %119 : vector<8x1xf32>
    %121 = vector.broadcast %120 : vector<8x1xf32> to vector<8x40xf32>
    %122 = arith.subf %115, %121 : vector<8x40xf32>
    %123 = arith.mulf %122, %122 : vector<8x40xf32>
    %cst_48 = arith.constant dense<0.000000e+00> : vector<8xf32>
    %124 = vector.multi_reduction <add>, %123, %cst_48 [1] : vector<8x40xf32> to vector<8xf32>
    %125 = vector.shape_cast %124 : vector<8xf32> to vector<8x1xf32>
    %cst_49 = arith.constant 2.500000e-02 : f32
    %126 = vector.broadcast %cst_49 : f32 to vector<8x1xf32>
    %127 = arith.mulf %125, %126 : vector<8x1xf32>
    %cst_50 = arith.constant 9.99999974E-6 : f32
    %128 = vector.broadcast %cst_50 : f32 to vector<8x1xf32>
    %129 = arith.addf %127, %128 : vector<8x1xf32>
    %130 = math.rsqrt %129 : vector<8x1xf32>
    %131 = vector.broadcast %130 : vector<8x1xf32> to vector<8x40xf32>
    %132 = arith.mulf %122, %131 : vector<8x40xf32>
    %cst_51 = arith.constant dense<0.000000e+00> : vector<8x96xf32>
    %133 = tpu.matmul %132, %3, %cst_51 {dimension_numbers = #tpu.dot_dimension_numbers<[1], [0], [0], [1], [0, 0, 1, 1], [], []>} : vector<8x40xf32>, vector<40x96xf32>, vector<8x96xf32> -> vector<8x96xf32>
    %134 = vector.broadcast %4 : vector<1x96xf32> to vector<8x96xf32>
    %135 = arith.addf %133, %134 : vector<8x96xf32>
    %cst_52 = arith.constant 5.000000e-01 : f32
    %136 = vector.broadcast %cst_52 : f32 to vector<8x96xf32>
    %137 = arith.mulf %136, %135 : vector<8x96xf32>
    %cst_53 = arith.constant 4.471500e-02 : f32
    %138 = vector.broadcast %cst_53 : f32 to vector<8x96xf32>
    %139 = arith.mulf %138, %135 : vector<8x96xf32>
    %140 = arith.mulf %139, %135 : vector<8x96xf32>
    %141 = arith.mulf %140, %135 : vector<8x96xf32>
    %142 = arith.addf %135, %141 : vector<8x96xf32>
    %cst_54 = arith.constant 0.797884583 : f32
    %143 = vector.broadcast %cst_54 : f32 to vector<8x96xf32>
    %144 = arith.mulf %143, %142 : vector<8x96xf32>
    %145 = math.tanh %144 : vector<8x96xf32>
    %cst_55 = arith.constant 1.000000e+00 : f32
    %146 = vector.broadcast %cst_55 : f32 to vector<8x96xf32>
    %147 = arith.addf %146, %145 : vector<8x96xf32>
    %148 = arith.mulf %137, %147 : vector<8x96xf32>
    %149 = tpu.concatenate %116, %148 in 1 : vector<8x32xf32>, vector<8x96xf32> -> vector<8x128xf32>
    %150 = arith.index_cast %c1_i32 : i32 to index
    %c0_56 = arith.constant 0 : index
    %c0_57 = arith.constant 0 : index
    %151 = vector.load %arg8[%150, %c0_56, %c0_57] : memref<8x8x128xf32, #tpu.memory_space<vmem>>, vector<1x8x128xf32>
    %152 = vector.shape_cast %151 : vector<1x8x128xf32> to vector<8x128xf32>
    %153 = vector.shape_cast %149 : vector<8x128xf32> to vector<1x8x128xf32>
    tpu.vector_store %arg8[%150, %c0_56, %c0_57], %153 {strides = array<i32>} : memref<8x8x128xf32, #tpu.memory_space<vmem>>, vector<1x8x128xf32>,
    %c2_i32 = arith.constant 2 : i32
    %154 = arith.index_cast %c2_i32 : i32 to index
    %c0_58 = arith.constant 0 : index
    %c0_59 = arith.constant 0 : index
    %155 = vector.load %arg3[%154, %c0_58, %c0_59] : memref<8x8x8xf32, #tpu.memory_space<vmem>>, vector<1x8x8xf32>
    %156 = vector.shape_cast %155 : vector<1x8x8xf32> to vector<8x8xf32>
    %157 = tpu.concatenate %0, %156, %116 in 1 : vector<8x4xf32>, vector<8x8xf32>, vector<8x32xf32> -> vector<8x44xf32>
    %cst_60 = arith.constant dense<0.000000e+00> : vector<8xf32>
    %158 = vector.multi_reduction <add>, %157, %cst_60 [1] : vector<8x44xf32> to vector<8xf32>
    %159 = vector.shape_cast %158 : vector<8xf32> to vector<8x1xf32>
    %cst_61 = arith.constant 0.0227272734 : f32
    %160 = vector.broadcast %cst_61 : f32 to vector<8x1xf32>
    %161 = arith.mulf %159, %160 : vector<8x1xf32>
    %162 = vector.broadcast %161 : vector<8x1xf32> to vector<8x44xf32>
    %163 = arith.subf %157, %162 : vector<8x44xf32>
    %164 = arith.mulf %163, %163 : vector<8x44xf32>
    %cst_62 = arith.constant dense<0.000000e+00> : vector<8xf32>
    %165 = vector.multi_reduction <add>, %164, %cst_62 [1] : vector<8x44xf32> to vector<8xf32>
    %166 = vector.shape_cast %165 : vector<8xf32> to vector<8x1xf32>
    %cst_63 = arith.constant 0.0227272734 : f32
    %167 = vector.broadcast %cst_63 : f32 to vector<8x1xf32>
    %168 = arith.mulf %166, %167 : vector<8x1xf32>
    %cst_64 = arith.constant 9.99999974E-6 : f32
    %169 = vector.broadcast %cst_64 : f32 to vector<8x1xf32>
    %170 = arith.addf %168, %169 : vector<8x1xf32>
    %171 = math.rsqrt %170 : vector<8x1xf32>
    %172 = vector.broadcast %171 : vector<8x1xf32> to vector<8x44xf32>
    %173 = arith.mulf %163, %172 : vector<8x44xf32>
    %cst_65 = arith.constant dense<0.000000e+00> : vector<8x40xf32>
    %174 = tpu.matmul %173, %1, %cst_65 {dimension_numbers = #tpu.dot_dimension_numbers<[1], [0], [0], [1], [0, 0, 1, 1], [], []>} : vector<8x44xf32>, vector<44x40xf32>, vector<8x40xf32> -> vector<8x40xf32>
    %175 = vector.broadcast %2 : vector<1x40xf32> to vector<8x40xf32>
    %176 = arith.addf %174, %175 : vector<8x40xf32>
    %cst_66 = arith.constant 5.000000e-01 : f32
    %177 = vector.broadcast %cst_66 : f32 to vector<8x40xf32>
    %178 = arith.mulf %177, %176 : vector<8x40xf32>
    %cst_67 = arith.constant 4.471500e-02 : f32
    %179 = vector.broadcast %cst_67 : f32 to vector<8x40xf32>
    %180 = arith.mulf %179, %176 : vector<8x40xf32>
    %181 = arith.mulf %180, %176 : vector<8x40xf32>
    %182 = arith.mulf %181, %176 : vector<8x40xf32>
    %183 = arith.addf %176, %182 : vector<8x40xf32>
    %cst_68 = arith.constant 0.797884583 : f32
    %184 = vector.broadcast %cst_68 : f32 to vector<8x40xf32>
    %185 = arith.mulf %184, %183 : vector<8x40xf32>
    %186 = math.tanh %185 : vector<8x40xf32>
    %cst_69 = arith.constant 1.000000e+00 : f32
    %187 = vector.broadcast %cst_69 : f32 to vector<8x40xf32>
    %188 = arith.addf %187, %186 : vector<8x40xf32>
    %189 = arith.mulf %178, %188 : vector<8x40xf32>
    %190 = vector.extract_strided_slice %189 {offsets = [0, 0], sizes = [8, 32], strides = [1, 1]} : vector<8x40xf32> to vector<8x32xf32>
    %cst_70 = arith.constant dense<0.000000e+00> : vector<8xf32>
    %191 = vector.multi_reduction <add>, %189, %cst_70 [1] : vector<8x40xf32> to vector<8xf32>
    %192 = vector.shape_cast %191 : vector<8xf32> to vector<8x1xf32>
    %cst_71 = arith.constant 2.500000e-02 : f32
    %193 = vector.broadcast %cst_71 : f32 to vector<8x1xf32>
    %194 = arith.mulf %192, %193 : vector<8x1xf32>
    %195 = vector.broadcast %194 : vector<8x1xf32> to vector<8x40xf32>
    %196 = arith.subf %189, %195 : vector<8x40xf32>
    %197 = arith.mulf %196, %196 : vector<8x40xf32>
    %cst_72 = arith.constant dense<0.000000e+00> : vector<8xf32>
    %198 = vector.multi_reduction <add>, %197, %cst_72 [1] : vector<8x40xf32> to vector<8xf32>
    %199 = vector.shape_cast %198 : vector<8xf32> to vector<8x1xf32>
    %cst_73 = arith.constant 2.500000e-02 : f32
    %200 = vector.broadcast %cst_73 : f32 to vector<8x1xf32>
    %201 = arith.mulf %199, %200 : vector<8x1xf32>
    %cst_74 = arith.constant 9.99999974E-6 : f32
    %202 = vector.broadcast %cst_74 : f32 to vector<8x1xf32>
    %203 = arith.addf %201, %202 : vector<8x1xf32>
    %204 = math.rsqrt %203 : vector<8x1xf32>
    %205 = vector.broadcast %204 : vector<8x1xf32> to vector<8x40xf32>
    %206 = arith.mulf %196, %205 : vector<8x40xf32>
    %cst_75 = arith.constant dense<0.000000e+00> : vector<8x96xf32>
    %207 = tpu.matmul %206, %3, %cst_75 {dimension_numbers = #tpu.dot_dimension_numbers<[1], [0], [0], [1], [0, 0, 1, 1], [], []>} : vector<8x40xf32>, vector<40x96xf32>, vector<8x96xf32> -> vector<8x96xf32>
    %208 = vector.broadcast %4 : vector<1x96xf32> to vector<8x96xf32>
    %209 = arith.addf %207, %208 : vector<8x96xf32>
    %cst_76 = arith.constant 5.000000e-01 : f32
    %210 = vector.broadcast %cst_76 : f32 to vector<8x96xf32>
    %211 = arith.mulf %210, %209 : vector<8x96xf32>
    %cst_77 = arith.constant 4.471500e-02 : f32
    %212 = vector.broadcast %cst_77 : f32 to vector<8x96xf32>
    %213 = arith.mulf %212, %209 : vector<8x96xf32>
    %214 = arith.mulf %213, %209 : vector<8x96xf32>
    %215 = arith.mulf %214, %209 : vector<8x96xf32>
    %216 = arith.addf %209, %215 : vector<8x96xf32>
    %cst_78 = arith.constant 0.797884583 : f32
    %217 = vector.broadcast %cst_78 : f32 to vector<8x96xf32>
    %218 = arith.mulf %217, %216 : vector<8x96xf32>
    %219 = math.tanh %218 : vector<8x96xf32>
    %cst_79 = arith.constant 1.000000e+00 : f32
    %220 = vector.broadcast %cst_79 : f32 to vector<8x96xf32>
    %221 = arith.addf %220, %219 : vector<8x96xf32>
    %222 = arith.mulf %211, %221 : vector<8x96xf32>
    %223 = tpu.concatenate %190, %222 in 1 : vector<8x32xf32>, vector<8x96xf32> -> vector<8x128xf32>
    %224 = arith.index_cast %c2_i32 : i32 to index
    %c0_80 = arith.constant 0 : index
    %c0_81 = arith.constant 0 : index
    %225 = vector.load %arg8[%224, %c0_80, %c0_81] : memref<8x8x128xf32, #tpu.memory_space<vmem>>, vector<1x8x128xf32>
    %226 = vector.shape_cast %225 : vector<1x8x128xf32> to vector<8x128xf32>
    %227 = vector.shape_cast %223 : vector<8x128xf32> to vector<1x8x128xf32>
    tpu.vector_store %arg8[%224, %c0_80, %c0_81], %227 {strides = array<i32>} : memref<8x8x128xf32, #tpu.memory_space<vmem>>, vector<1x8x128xf32>,
    %c3_i32 = arith.constant 3 : i32
    %228 = arith.index_cast %c3_i32 : i32 to index
    %c0_82 = arith.constant 0 : index
    %c0_83 = arith.constant 0 : index
    %229 = vector.load %arg3[%228, %c0_82, %c0_83] : memref<8x8x8xf32, #tpu.memory_space<vmem>>, vector<1x8x8xf32>
    %230 = vector.shape_cast %229 : vector<1x8x8xf32> to vector<8x8xf32>
    %231 = tpu.concatenate %0, %230, %190 in 1 : vector<8x4xf32>, vector<8x8xf32>, vector<8x32xf32> -> vector<8x44xf32>
    %cst_84 = arith.constant dense<0.000000e+00> : vector<8xf32>
    %232 = vector.multi_reduction <add>, %231, %cst_84 [1] : vector<8x44xf32> to vector<8xf32>
    %233 = vector.shape_cast %232 : vector<8xf32> to vector<8x1xf32>
    %cst_85 = arith.constant 0.0227272734 : f32
    %234 = vector.broadcast %cst_85 : f32 to vector<8x1xf32>
    %235 = arith.mulf %233, %234 : vector<8x1xf32>
    %236 = vector.broadcast %235 : vector<8x1xf32> to vector<8x44xf32>
    %237 = arith.subf %231, %236 : vector<8x44xf32>
    %238 = arith.mulf %237, %237 : vector<8x44xf32>
    %cst_86 = arith.constant dense<0.000000e+00> : vector<8xf32>
    %239 = vector.multi_reduction <add>, %238, %cst_86 [1] : vector<8x44xf32> to vector<8xf32>
    %240 = vector.shape_cast %239 : vector<8xf32> to vector<8x1xf32>
    %cst_87 = arith.constant 0.0227272734 : f32
    %241 = vector.broadcast %cst_87 : f32 to vector<8x1xf32>
    %242 = arith.mulf %240, %241 : vector<8x1xf32>
    %cst_88 = arith.constant 9.99999974E-6 : f32
    %243 = vector.broadcast %cst_88 : f32 to vector<8x1xf32>
    %244 = arith.addf %242, %243 : vector<8x1xf32>
    %245 = math.rsqrt %244 : vector<8x1xf32>
    %246 = vector.broadcast %245 : vector<8x1xf32> to vector<8x44xf32>
    %247 = arith.mulf %237, %246 : vector<8x44xf32>
    %cst_89 = arith.constant dense<0.000000e+00> : vector<8x40xf32>
    %248 = tpu.matmul %247, %1, %cst_89 {dimension_numbers = #tpu.dot_dimension_numbers<[1], [0], [0], [1], [0, 0, 1, 1], [], []>} : vector<8x44xf32>, vector<44x40xf32>, vector<8x40xf32> -> vector<8x40xf32>
    %249 = vector.broadcast %2 : vector<1x40xf32> to vector<8x40xf32>
    %250 = arith.addf %248, %249 : vector<8x40xf32>
    %cst_90 = arith.constant 5.000000e-01 : f32
    %251 = vector.broadcast %cst_90 : f32 to vector<8x40xf32>
    %252 = arith.mulf %251, %250 : vector<8x40xf32>
    %cst_91 = arith.constant 4.471500e-02 : f32
    %253 = vector.broadcast %cst_91 : f32 to vector<8x40xf32>
    %254 = arith.mulf %253, %250 : vector<8x40xf32>
    %255 = arith.mulf %254, %250 : vector<8x40xf32>
    %256 = arith.mulf %255, %250 : vector<8x40xf32>
    %257 = arith.addf %250, %256 : vector<8x40xf32>
    %cst_92 = arith.constant 0.797884583 : f32
    %258 = vector.broadcast %cst_92 : f32 to vector<8x40xf32>
    %259 = arith.mulf %258, %257 : vector<8x40xf32>
    %260 = math.tanh %259 : vector<8x40xf32>
    %cst_93 = arith.constant 1.000000e+00 : f32
    %261 = vector.broadcast %cst_93 : f32 to vector<8x40xf32>
    %262 = arith.addf %261, %260 : vector<8x40xf32>
    %263 = arith.mulf %252, %262 : vector<8x40xf32>
    %264 = vector.extract_strided_slice %263 {offsets = [0, 0], sizes = [8, 32], strides = [1, 1]} : vector<8x40xf32> to vector<8x32xf32>
    %cst_94 = arith.constant dense<0.000000e+00> : vector<8xf32>
    %265 = vector.multi_reduction <add>, %263, %cst_94 [1] : vector<8x40xf32> to vector<8xf32>
    %266 = vector.shape_cast %265 : vector<8xf32> to vector<8x1xf32>
    %cst_95 = arith.constant 2.500000e-02 : f32
    %267 = vector.broadcast %cst_95 : f32 to vector<8x1xf32>
    %268 = arith.mulf %266, %267 : vector<8x1xf32>
    %269 = vector.broadcast %268 : vector<8x1xf32> to vector<8x40xf32>
    %270 = arith.subf %263, %269 : vector<8x40xf32>
    %271 = arith.mulf %270, %270 : vector<8x40xf32>
    %cst_96 = arith.constant dense<0.000000e+00> : vector<8xf32>
    %272 = vector.multi_reduction <add>, %271, %cst_96 [1] : vector<8x40xf32> to vector<8xf32>
    %273 = vector.shape_cast %272 : vector<8xf32> to vector<8x1xf32>
    %cst_97 = arith.constant 2.500000e-02 : f32
    %274 = vector.broadcast %cst_97 : f32 to vector<8x1xf32>
    %275 = arith.mulf %273, %274 : vector<8x1xf32>
    %cst_98 = arith.constant 9.99999974E-6 : f32
    %276 = vector.broadcast %cst_98 : f32 to vector<8x1xf32>
    %277 = arith.addf %275, %276 : vector<8x1xf32>
    %278 = math.rsqrt %277 : vector<8x1xf32>
    %279 = vector.broadcast %278 : vector<8x1xf32> to vector<8x40xf32>
    %280 = arith.mulf %270, %279 : vector<8x40xf32>
    %cst_99 = arith.constant dense<0.000000e+00> : vector<8x96xf32>
    %281 = tpu.matmul %280, %3, %cst_99 {dimension_numbers = #tpu.dot_dimension_numbers<[1], [0], [0], [1], [0, 0, 1, 1], [], []>} : vector<8x40xf32>, vector<40x96xf32>, vector<8x96xf32> -> vector<8x96xf32>
    %282 = vector.broadcast %4 : vector<1x96xf32> to vector<8x96xf32>
    %283 = arith.addf %281, %282 : vector<8x96xf32>
    %cst_100 = arith.constant 5.000000e-01 : f32
    %284 = vector.broadcast %cst_100 : f32 to vector<8x96xf32>
    %285 = arith.mulf %284, %283 : vector<8x96xf32>
    %cst_101 = arith.constant 4.471500e-02 : f32
    %286 = vector.broadcast %cst_101 : f32 to vector<8x96xf32>
    %287 = arith.mulf %286, %283 : vector<8x96xf32>
    %288 = arith.mulf %287, %283 : vector<8x96xf32>
    %289 = arith.mulf %288, %283 : vector<8x96xf32>
    %290 = arith.addf %283, %289 : vector<8x96xf32>
    %cst_102 = arith.constant 0.797884583 : f32
    %291 = vector.broadcast %cst_102 : f32 to vector<8x96xf32>
    %292 = arith.mulf %291, %290 : vector<8x96xf32>
    %293 = math.tanh %292 : vector<8x96xf32>
    %cst_103 = arith.constant 1.000000e+00 : f32
    %294 = vector.broadcast %cst_103 : f32 to vector<8x96xf32>
    %295 = arith.addf %294, %293 : vector<8x96xf32>
    %296 = arith.mulf %285, %295 : vector<8x96xf32>
    %297 = tpu.concatenate %264, %296 in 1 : vector<8x32xf32>, vector<8x96xf32> -> vector<8x128xf32>
    %298 = arith.index_cast %c3_i32 : i32 to index
    %c0_104 = arith.constant 0 : index
    %c0_105 = arith.constant 0 : index
    %299 = vector.load %arg8[%298, %c0_104, %c0_105] : memref<8x8x128xf32, #tpu.memory_space<vmem>>, vector<1x8x128xf32>
    %300 = vector.shape_cast %299 : vector<1x8x128xf32> to vector<8x128xf32>
    %301 = vector.shape_cast %297 : vector<8x128xf32> to vector<1x8x128xf32>
    tpu.vector_store %arg8[%298, %c0_104, %c0_105], %301 {strides = array<i32>} : memref<8x8x128xf32, #tpu.memory_space<vmem>>, vector<1x8x128xf32>,
    %c4_i32 = arith.constant 4 : i32
    %302 = arith.index_cast %c4_i32 : i32 to index
    %c0_106 = arith.constant 0 : index
    %c0_107 = arith.constant 0 : index
    %303 = vector.load %arg3[%302, %c0_106, %c0_107] : memref<8x8x8xf32, #tpu.memory_space<vmem>>, vector<1x8x8xf32>
    %304 = vector.shape_cast %303 : vector<1x8x8xf32> to vector<8x8xf32>
    %305 = tpu.concatenate %0, %304, %264 in 1 : vector<8x4xf32>, vector<8x8xf32>, vector<8x32xf32> -> vector<8x44xf32>
    %cst_108 = arith.constant dense<0.000000e+00> : vector<8xf32>
    %306 = vector.multi_reduction <add>, %305, %cst_108 [1] : vector<8x44xf32> to vector<8xf32>
    %307 = vector.shape_cast %306 : vector<8xf32> to vector<8x1xf32>
    %cst_109 = arith.constant 0.0227272734 : f32
    %308 = vector.broadcast %cst_109 : f32 to vector<8x1xf32>
    %309 = arith.mulf %307, %308 : vector<8x1xf32>
    %310 = vector.broadcast %309 : vector<8x1xf32> to vector<8x44xf32>
    %311 = arith.subf %305, %310 : vector<8x44xf32>
    %312 = arith.mulf %311, %311 : vector<8x44xf32>
    %cst_110 = arith.constant dense<0.000000e+00> : vector<8xf32>
    %313 = vector.multi_reduction <add>, %312, %cst_110 [1] : vector<8x44xf32> to vector<8xf32>
    %314 = vector.shape_cast %313 : vector<8xf32> to vector<8x1xf32>
    %cst_111 = arith.constant 0.0227272734 : f32
    %315 = vector.broadcast %cst_111 : f32 to vector<8x1xf32>
    %316 = arith.mulf %314, %315 : vector<8x1xf32>
    %cst_112 = arith.constant 9.99999974E-6 : f32
    %317 = vector.broadcast %cst_112 : f32 to vector<8x1xf32>
    %318 = arith.addf %316, %317 : vector<8x1xf32>
    %319 = math.rsqrt %318 : vector<8x1xf32>
    %320 = vector.broadcast %319 : vector<8x1xf32> to vector<8x44xf32>
    %321 = arith.mulf %311, %320 : vector<8x44xf32>
    %cst_113 = arith.constant dense<0.000000e+00> : vector<8x40xf32>
    %322 = tpu.matmul %321, %1, %cst_113 {dimension_numbers = #tpu.dot_dimension_numbers<[1], [0], [0], [1], [0, 0, 1, 1], [], []>} : vector<8x44xf32>, vector<44x40xf32>, vector<8x40xf32> -> vector<8x40xf32>
    %323 = vector.broadcast %2 : vector<1x40xf32> to vector<8x40xf32>
    %324 = arith.addf %322, %323 : vector<8x40xf32>
    %cst_114 = arith.constant 5.000000e-01 : f32
    %325 = vector.broadcast %cst_114 : f32 to vector<8x40xf32>
    %326 = arith.mulf %325, %324 : vector<8x40xf32>
    %cst_115 = arith.constant 4.471500e-02 : f32
    %327 = vector.broadcast %cst_115 : f32 to vector<8x40xf32>
    %328 = arith.mulf %327, %324 : vector<8x40xf32>
    %329 = arith.mulf %328, %324 : vector<8x40xf32>
    %330 = arith.mulf %329, %324 : vector<8x40xf32>
    %331 = arith.addf %324, %330 : vector<8x40xf32>
    %cst_116 = arith.constant 0.797884583 : f32
    %332 = vector.broadcast %cst_116 : f32 to vector<8x40xf32>
    %333 = arith.mulf %332, %331 : vector<8x40xf32>
    %334 = math.tanh %333 : vector<8x40xf32>
    %cst_117 = arith.constant 1.000000e+00 : f32
    %335 = vector.broadcast %cst_117 : f32 to vector<8x40xf32>
    %336 = arith.addf %335, %334 : vector<8x40xf32>
    %337 = arith.mulf %326, %336 : vector<8x40xf32>
    %338 = vector.extract_strided_slice %337 {offsets = [0, 0], sizes = [8, 32], strides = [1, 1]} : vector<8x40xf32> to vector<8x32xf32>
    %cst_118 = arith.constant dense<0.000000e+00> : vector<8xf32>
    %339 = vector.multi_reduction <add>, %337, %cst_118 [1] : vector<8x40xf32> to vector<8xf32>
    %340 = vector.shape_cast %339 : vector<8xf32> to vector<8x1xf32>
    %cst_119 = arith.constant 2.500000e-02 : f32
    %341 = vector.broadcast %cst_119 : f32 to vector<8x1xf32>
    %342 = arith.mulf %340, %341 : vector<8x1xf32>
    %343 = vector.broadcast %342 : vector<8x1xf32> to vector<8x40xf32>
    %344 = arith.subf %337, %343 : vector<8x40xf32>
    %345 = arith.mulf %344, %344 : vector<8x40xf32>
    %cst_120 = arith.constant dense<0.000000e+00> : vector<8xf32>
    %346 = vector.multi_reduction <add>, %345, %cst_120 [1] : vector<8x40xf32> to vector<8xf32>
    %347 = vector.shape_cast %346 : vector<8xf32> to vector<8x1xf32>
    %cst_121 = arith.constant 2.500000e-02 : f32
    %348 = vector.broadcast %cst_121 : f32 to vector<8x1xf32>
    %349 = arith.mulf %347, %348 : vector<8x1xf32>
    %cst_122 = arith.constant 9.99999974E-6 : f32
    %350 = vector.broadcast %cst_122 : f32 to vector<8x1xf32>
    %351 = arith.addf %349, %350 : vector<8x1xf32>
    %352 = math.rsqrt %351 : vector<8x1xf32>
    %353 = vector.broadcast %352 : vector<8x1xf32> to vector<8x40xf32>
    %354 = arith.mulf %344, %353 : vector<8x40xf32>
    %cst_123 = arith.constant dense<0.000000e+00> : vector<8x96xf32>
    %355 = tpu.matmul %354, %3, %cst_123 {dimension_numbers = #tpu.dot_dimension_numbers<[1], [0], [0], [1], [0, 0, 1, 1], [], []>} : vector<8x40xf32>, vector<40x96xf32>, vector<8x96xf32> -> vector<8x96xf32>
    %356 = vector.broadcast %4 : vector<1x96xf32> to vector<8x96xf32>
    %357 = arith.addf %355, %356 : vector<8x96xf32>
    %cst_124 = arith.constant 5.000000e-01 : f32
    %358 = vector.broadcast %cst_124 : f32 to vector<8x96xf32>
    %359 = arith.mulf %358, %357 : vector<8x96xf32>
    %cst_125 = arith.constant 4.471500e-02 : f32
    %360 = vector.broadcast %cst_125 : f32 to vector<8x96xf32>
    %361 = arith.mulf %360, %357 : vector<8x96xf32>
    %362 = arith.mulf %361, %357 : vector<8x96xf32>
    %363 = arith.mulf %362, %357 : vector<8x96xf32>
    %364 = arith.addf %357, %363 : vector<8x96xf32>
    %cst_126 = arith.constant 0.797884583 : f32
    %365 = vector.broadcast %cst_126 : f32 to vector<8x96xf32>
    %366 = arith.mulf %365, %364 : vector<8x96xf32>
    %367 = math.tanh %366 : vector<8x96xf32>
    %cst_127 = arith.constant 1.000000e+00 : f32
    %368 = vector.broadcast %cst_127 : f32 to vector<8x96xf32>
    %369 = arith.addf %368, %367 : vector<8x96xf32>
    %370 = arith.mulf %359, %369 : vector<8x96xf32>
    %371 = tpu.concatenate %338, %370 in 1 : vector<8x32xf32>, vector<8x96xf32> -> vector<8x128xf32>
    %372 = arith.index_cast %c4_i32 : i32 to index
    %c0_128 = arith.constant 0 : index
    %c0_129 = arith.constant 0 : index
    %373 = vector.load %arg8[%372, %c0_128, %c0_129] : memref<8x8x128xf32, #tpu.memory_space<vmem>>, vector<1x8x128xf32>
    %374 = vector.shape_cast %373 : vector<1x8x128xf32> to vector<8x128xf32>
    %375 = vector.shape_cast %371 : vector<8x128xf32> to vector<1x8x128xf32>
    tpu.vector_store %arg8[%372, %c0_128, %c0_129], %375 {strides = array<i32>} : memref<8x8x128xf32, #tpu.memory_space<vmem>>, vector<1x8x128xf32>,
    %c5_i32 = arith.constant 5 : i32
    %376 = arith.index_cast %c5_i32 : i32 to index
    %c0_130 = arith.constant 0 : index
    %c0_131 = arith.constant 0 : index
    %377 = vector.load %arg3[%376, %c0_130, %c0_131] : memref<8x8x8xf32, #tpu.memory_space<vmem>>, vector<1x8x8xf32>
    %378 = vector.shape_cast %377 : vector<1x8x8xf32> to vector<8x8xf32>
    %379 = tpu.concatenate %0, %378, %338 in 1 : vector<8x4xf32>, vector<8x8xf32>, vector<8x32xf32> -> vector<8x44xf32>
    %cst_132 = arith.constant dense<0.000000e+00> : vector<8xf32>
    %380 = vector.multi_reduction <add>, %379, %cst_132 [1] : vector<8x44xf32> to vector<8xf32>
    %381 = vector.shape_cast %380 : vector<8xf32> to vector<8x1xf32>
    %cst_133 = arith.constant 0.0227272734 : f32
    %382 = vector.broadcast %cst_133 : f32 to vector<8x1xf32>
    %383 = arith.mulf %381, %382 : vector<8x1xf32>
    %384 = vector.broadcast %383 : vector<8x1xf32> to vector<8x44xf32>
    %385 = arith.subf %379, %384 : vector<8x44xf32>
    %386 = arith.mulf %385, %385 : vector<8x44xf32>
    %cst_134 = arith.constant dense<0.000000e+00> : vector<8xf32>
    %387 = vector.multi_reduction <add>, %386, %cst_134 [1] : vector<8x44xf32> to vector<8xf32>
    %388 = vector.shape_cast %387 : vector<8xf32> to vector<8x1xf32>
    %cst_135 = arith.constant 0.0227272734 : f32
    %389 = vector.broadcast %cst_135 : f32 to vector<8x1xf32>
    %390 = arith.mulf %388, %389 : vector<8x1xf32>
    %cst_136 = arith.constant 9.99999974E-6 : f32
    %391 = vector.broadcast %cst_136 : f32 to vector<8x1xf32>
    %392 = arith.addf %390, %391 : vector<8x1xf32>
    %393 = math.rsqrt %392 : vector<8x1xf32>
    %394 = vector.broadcast %393 : vector<8x1xf32> to vector<8x44xf32>
    %395 = arith.mulf %385, %394 : vector<8x44xf32>
    %cst_137 = arith.constant dense<0.000000e+00> : vector<8x40xf32>
    %396 = tpu.matmul %395, %1, %cst_137 {dimension_numbers = #tpu.dot_dimension_numbers<[1], [0], [0], [1], [0, 0, 1, 1], [], []>} : vector<8x44xf32>, vector<44x40xf32>, vector<8x40xf32> -> vector<8x40xf32>
    %397 = vector.broadcast %2 : vector<1x40xf32> to vector<8x40xf32>
    %398 = arith.addf %396, %397 : vector<8x40xf32>
    %cst_138 = arith.constant 5.000000e-01 : f32
    %399 = vector.broadcast %cst_138 : f32 to vector<8x40xf32>
    %400 = arith.mulf %399, %398 : vector<8x40xf32>
    %cst_139 = arith.constant 4.471500e-02 : f32
    %401 = vector.broadcast %cst_139 : f32 to vector<8x40xf32>
    %402 = arith.mulf %401, %398 : vector<8x40xf32>
    %403 = arith.mulf %402, %398 : vector<8x40xf32>
    %404 = arith.mulf %403, %398 : vector<8x40xf32>
    %405 = arith.addf %398, %404 : vector<8x40xf32>
    %cst_140 = arith.constant 0.797884583 : f32
    %406 = vector.broadcast %cst_140 : f32 to vector<8x40xf32>
    %407 = arith.mulf %406, %405 : vector<8x40xf32>
    %408 = math.tanh %407 : vector<8x40xf32>
    %cst_141 = arith.constant 1.000000e+00 : f32
    %409 = vector.broadcast %cst_141 : f32 to vector<8x40xf32>
    %410 = arith.addf %409, %408 : vector<8x40xf32>
    %411 = arith.mulf %400, %410 : vector<8x40xf32>
    %412 = vector.extract_strided_slice %411 {offsets = [0, 0], sizes = [8, 32], strides = [1, 1]} : vector<8x40xf32> to vector<8x32xf32>
    %cst_142 = arith.constant dense<0.000000e+00> : vector<8xf32>
    %413 = vector.multi_reduction <add>, %411, %cst_142 [1] : vector<8x40xf32> to vector<8xf32>
    %414 = vector.shape_cast %413 : vector<8xf32> to vector<8x1xf32>
    %cst_143 = arith.constant 2.500000e-02 : f32
    %415 = vector.broadcast %cst_143 : f32 to vector<8x1xf32>
    %416 = arith.mulf %414, %415 : vector<8x1xf32>
    %417 = vector.broadcast %416 : vector<8x1xf32> to vector<8x40xf32>
    %418 = arith.subf %411, %417 : vector<8x40xf32>
    %419 = arith.mulf %418, %418 : vector<8x40xf32>
    %cst_144 = arith.constant dense<0.000000e+00> : vector<8xf32>
    %420 = vector.multi_reduction <add>, %419, %cst_144 [1] : vector<8x40xf32> to vector<8xf32>
    %421 = vector.shape_cast %420 : vector<8xf32> to vector<8x1xf32>
    %cst_145 = arith.constant 2.500000e-02 : f32
    %422 = vector.broadcast %cst_145 : f32 to vector<8x1xf32>
    %423 = arith.mulf %421, %422 : vector<8x1xf32>
    %cst_146 = arith.constant 9.99999974E-6 : f32
    %424 = vector.broadcast %cst_146 : f32 to vector<8x1xf32>
    %425 = arith.addf %423, %424 : vector<8x1xf32>
    %426 = math.rsqrt %425 : vector<8x1xf32>
    %427 = vector.broadcast %426 : vector<8x1xf32> to vector<8x40xf32>
    %428 = arith.mulf %418, %427 : vector<8x40xf32>
    %cst_147 = arith.constant dense<0.000000e+00> : vector<8x96xf32>
    %429 = tpu.matmul %428, %3, %cst_147 {dimension_numbers = #tpu.dot_dimension_numbers<[1], [0], [0], [1], [0, 0, 1, 1], [], []>} : vector<8x40xf32>, vector<40x96xf32>, vector<8x96xf32> -> vector<8x96xf32>
    %430 = vector.broadcast %4 : vector<1x96xf32> to vector<8x96xf32>
    %431 = arith.addf %429, %430 : vector<8x96xf32>
    %cst_148 = arith.constant 5.000000e-01 : f32
    %432 = vector.broadcast %cst_148 : f32 to vector<8x96xf32>
    %433 = arith.mulf %432, %431 : vector<8x96xf32>
    %cst_149 = arith.constant 4.471500e-02 : f32
    %434 = vector.broadcast %cst_149 : f32 to vector<8x96xf32>
    %435 = arith.mulf %434, %431 : vector<8x96xf32>
    %436 = arith.mulf %435, %431 : vector<8x96xf32>
    %437 = arith.mulf %436, %431 : vector<8x96xf32>
    %438 = arith.addf %431, %437 : vector<8x96xf32>
    %cst_150 = arith.constant 0.797884583 : f32
    %439 = vector.broadcast %cst_150 : f32 to vector<8x96xf32>
    %440 = arith.mulf %439, %438 : vector<8x96xf32>
    %441 = math.tanh %440 : vector<8x96xf32>
    %cst_151 = arith.constant 1.000000e+00 : f32
    %442 = vector.broadcast %cst_151 : f32 to vector<8x96xf32>
    %443 = arith.addf %442, %441 : vector<8x96xf32>
    %444 = arith.mulf %433, %443 : vector<8x96xf32>
    %445 = tpu.concatenate %412, %444 in 1 : vector<8x32xf32>, vector<8x96xf32> -> vector<8x128xf32>
    %446 = arith.index_cast %c5_i32 : i32 to index
    %c0_152 = arith.constant 0 : index
    %c0_153 = arith.constant 0 : index
    %447 = vector.load %arg8[%446, %c0_152, %c0_153] : memref<8x8x128xf32, #tpu.memory_space<vmem>>, vector<1x8x128xf32>
    %448 = vector.shape_cast %447 : vector<1x8x128xf32> to vector<8x128xf32>
    %449 = vector.shape_cast %445 : vector<8x128xf32> to vector<1x8x128xf32>
    tpu.vector_store %arg8[%446, %c0_152, %c0_153], %449 {strides = array<i32>} : memref<8x8x128xf32, #tpu.memory_space<vmem>>, vector<1x8x128xf32>,
    %c6_i32 = arith.constant 6 : i32
    %450 = arith.index_cast %c6_i32 : i32 to index
    %c0_154 = arith.constant 0 : index
    %c0_155 = arith.constant 0 : index
    %451 = vector.load %arg3[%450, %c0_154, %c0_155] : memref<8x8x8xf32, #tpu.memory_space<vmem>>, vector<1x8x8xf32>
    %452 = vector.shape_cast %451 : vector<1x8x8xf32> to vector<8x8xf32>
    %453 = tpu.concatenate %0, %452, %412 in 1 : vector<8x4xf32>, vector<8x8xf32>, vector<8x32xf32> -> vector<8x44xf32>
    %cst_156 = arith.constant dense<0.000000e+00> : vector<8xf32>
    %454 = vector.multi_reduction <add>, %453, %cst_156 [1] : vector<8x44xf32> to vector<8xf32>
    %455 = vector.shape_cast %454 : vector<8xf32> to vector<8x1xf32>
    %cst_157 = arith.constant 0.0227272734 : f32
    %456 = vector.broadcast %cst_157 : f32 to vector<8x1xf32>
    %457 = arith.mulf %455, %456 : vector<8x1xf32>
    %458 = vector.broadcast %457 : vector<8x1xf32> to vector<8x44xf32>
    %459 = arith.subf %453, %458 : vector<8x44xf32>
    %460 = arith.mulf %459, %459 : vector<8x44xf32>
    %cst_158 = arith.constant dense<0.000000e+00> : vector<8xf32>
    %461 = vector.multi_reduction <add>, %460, %cst_158 [1] : vector<8x44xf32> to vector<8xf32>
    %462 = vector.shape_cast %461 : vector<8xf32> to vector<8x1xf32>
    %cst_159 = arith.constant 0.0227272734 : f32
    %463 = vector.broadcast %cst_159 : f32 to vector<8x1xf32>
    %464 = arith.mulf %462, %463 : vector<8x1xf32>
    %cst_160 = arith.constant 9.99999974E-6 : f32
    %465 = vector.broadcast %cst_160 : f32 to vector<8x1xf32>
    %466 = arith.addf %464, %465 : vector<8x1xf32>
    %467 = math.rsqrt %466 : vector<8x1xf32>
    %468 = vector.broadcast %467 : vector<8x1xf32> to vector<8x44xf32>
    %469 = arith.mulf %459, %468 : vector<8x44xf32>
    %cst_161 = arith.constant dense<0.000000e+00> : vector<8x40xf32>
    %470 = tpu.matmul %469, %1, %cst_161 {dimension_numbers = #tpu.dot_dimension_numbers<[1], [0], [0], [1], [0, 0, 1, 1], [], []>} : vector<8x44xf32>, vector<44x40xf32>, vector<8x40xf32> -> vector<8x40xf32>
    %471 = vector.broadcast %2 : vector<1x40xf32> to vector<8x40xf32>
    %472 = arith.addf %470, %471 : vector<8x40xf32>
    %cst_162 = arith.constant 5.000000e-01 : f32
    %473 = vector.broadcast %cst_162 : f32 to vector<8x40xf32>
    %474 = arith.mulf %473, %472 : vector<8x40xf32>
    %cst_163 = arith.constant 4.471500e-02 : f32
    %475 = vector.broadcast %cst_163 : f32 to vector<8x40xf32>
    %476 = arith.mulf %475, %472 : vector<8x40xf32>
    %477 = arith.mulf %476, %472 : vector<8x40xf32>
    %478 = arith.mulf %477, %472 : vector<8x40xf32>
    %479 = arith.addf %472, %478 : vector<8x40xf32>
    %cst_164 = arith.constant 0.797884583 : f32
    %480 = vector.broadcast %cst_164 : f32 to vector<8x40xf32>
    %481 = arith.mulf %480, %479 : vector<8x40xf32>
    %482 = math.tanh %481 : vector<8x40xf32>
    %cst_165 = arith.constant 1.000000e+00 : f32
    %483 = vector.broadcast %cst_165 : f32 to vector<8x40xf32>
    %484 = arith.addf %483, %482 : vector<8x40xf32>
    %485 = arith.mulf %474, %484 : vector<8x40xf32>
    %486 = vector.extract_strided_slice %485 {offsets = [0, 0], sizes = [8, 32], strides = [1, 1]} : vector<8x40xf32> to vector<8x32xf32>
    %cst_166 = arith.constant dense<0.000000e+00> : vector<8xf32>
    %487 = vector.multi_reduction <add>, %485, %cst_166 [1] : vector<8x40xf32> to vector<8xf32>
    %488 = vector.shape_cast %487 : vector<8xf32> to vector<8x1xf32>
    %cst_167 = arith.constant 2.500000e-02 : f32
    %489 = vector.broadcast %cst_167 : f32 to vector<8x1xf32>
    %490 = arith.mulf %488, %489 : vector<8x1xf32>
    %491 = vector.broadcast %490 : vector<8x1xf32> to vector<8x40xf32>
    %492 = arith.subf %485, %491 : vector<8x40xf32>
    %493 = arith.mulf %492, %492 : vector<8x40xf32>
    %cst_168 = arith.constant dense<0.000000e+00> : vector<8xf32>
    %494 = vector.multi_reduction <add>, %493, %cst_168 [1] : vector<8x40xf32> to vector<8xf32>
    %495 = vector.shape_cast %494 : vector<8xf32> to vector<8x1xf32>
    %cst_169 = arith.constant 2.500000e-02 : f32
    %496 = vector.broadcast %cst_169 : f32 to vector<8x1xf32>
    %497 = arith.mulf %495, %496 : vector<8x1xf32>
    %cst_170 = arith.constant 9.99999974E-6 : f32
    %498 = vector.broadcast %cst_170 : f32 to vector<8x1xf32>
    %499 = arith.addf %497, %498 : vector<8x1xf32>
    %500 = math.rsqrt %499 : vector<8x1xf32>
    %501 = vector.broadcast %500 : vector<8x1xf32> to vector<8x40xf32>
    %502 = arith.mulf %492, %501 : vector<8x40xf32>
    %cst_171 = arith.constant dense<0.000000e+00> : vector<8x96xf32>
    %503 = tpu.matmul %502, %3, %cst_171 {dimension_numbers = #tpu.dot_dimension_numbers<[1], [0], [0], [1], [0, 0, 1, 1], [], []>} : vector<8x40xf32>, vector<40x96xf32>, vector<8x96xf32> -> vector<8x96xf32>
    %504 = vector.broadcast %4 : vector<1x96xf32> to vector<8x96xf32>
    %505 = arith.addf %503, %504 : vector<8x96xf32>
    %cst_172 = arith.constant 5.000000e-01 : f32
    %506 = vector.broadcast %cst_172 : f32 to vector<8x96xf32>
    %507 = arith.mulf %506, %505 : vector<8x96xf32>
    %cst_173 = arith.constant 4.471500e-02 : f32
    %508 = vector.broadcast %cst_173 : f32 to vector<8x96xf32>
    %509 = arith.mulf %508, %505 : vector<8x96xf32>
    %510 = arith.mulf %509, %505 : vector<8x96xf32>
    %511 = arith.mulf %510, %505 : vector<8x96xf32>
    %512 = arith.addf %505, %511 : vector<8x96xf32>
    %cst_174 = arith.constant 0.797884583 : f32
    %513 = vector.broadcast %cst_174 : f32 to vector<8x96xf32>
    %514 = arith.mulf %513, %512 : vector<8x96xf32>
    %515 = math.tanh %514 : vector<8x96xf32>
    %cst_175 = arith.constant 1.000000e+00 : f32
    %516 = vector.broadcast %cst_175 : f32 to vector<8x96xf32>
    %517 = arith.addf %516, %515 : vector<8x96xf32>
    %518 = arith.mulf %507, %517 : vector<8x96xf32>
    %519 = tpu.concatenate %486, %518 in 1 : vector<8x32xf32>, vector<8x96xf32> -> vector<8x128xf32>
    %520 = arith.index_cast %c6_i32 : i32 to index
    %c0_176 = arith.constant 0 : index
    %c0_177 = arith.constant 0 : index
    %521 = vector.load %arg8[%520, %c0_176, %c0_177] : memref<8x8x128xf32, #tpu.memory_space<vmem>>, vector<1x8x128xf32>
    %522 = vector.shape_cast %521 : vector<1x8x128xf32> to vector<8x128xf32>
    %523 = vector.shape_cast %519 : vector<8x128xf32> to vector<1x8x128xf32>
    tpu.vector_store %arg8[%520, %c0_176, %c0_177], %523 {strides = array<i32>} : memref<8x8x128xf32, #tpu.memory_space<vmem>>, vector<1x8x128xf32>,
    %c7_i32 = arith.constant 7 : i32
    %524 = arith.index_cast %c7_i32 : i32 to index
    %c0_178 = arith.constant 0 : index
    %c0_179 = arith.constant 0 : index
    %525 = vector.load %arg3[%524, %c0_178, %c0_179] : memref<8x8x8xf32, #tpu.memory_space<vmem>>, vector<1x8x8xf32>
    %526 = vector.shape_cast %525 : vector<1x8x8xf32> to vector<8x8xf32>
    %527 = tpu.concatenate %0, %526, %486 in 1 : vector<8x4xf32>, vector<8x8xf32>, vector<8x32xf32> -> vector<8x44xf32>
    %cst_180 = arith.constant dense<0.000000e+00> : vector<8xf32>
    %528 = vector.multi_reduction <add>, %527, %cst_180 [1] : vector<8x44xf32> to vector<8xf32>
    %529 = vector.shape_cast %528 : vector<8xf32> to vector<8x1xf32>
    %cst_181 = arith.constant 0.0227272734 : f32
    %530 = vector.broadcast %cst_181 : f32 to vector<8x1xf32>
    %531 = arith.mulf %529, %530 : vector<8x1xf32>
    %532 = vector.broadcast %531 : vector<8x1xf32> to vector<8x44xf32>
    %533 = arith.subf %527, %532 : vector<8x44xf32>
    %534 = arith.mulf %533, %533 : vector<8x44xf32>
    %cst_182 = arith.constant dense<0.000000e+00> : vector<8xf32>
    %535 = vector.multi_reduction <add>, %534, %cst_182 [1] : vector<8x44xf32> to vector<8xf32>
    %536 = vector.shape_cast %535 : vector<8xf32> to vector<8x1xf32>
    %cst_183 = arith.constant 0.0227272734 : f32
    %537 = vector.broadcast %cst_183 : f32 to vector<8x1xf32>
    %538 = arith.mulf %536, %537 : vector<8x1xf32>
    %cst_184 = arith.constant 9.99999974E-6 : f32
    %539 = vector.broadcast %cst_184 : f32 to vector<8x1xf32>
    %540 = arith.addf %538, %539 : vector<8x1xf32>
    %541 = math.rsqrt %540 : vector<8x1xf32>
    %542 = vector.broadcast %541 : vector<8x1xf32> to vector<8x44xf32>
    %543 = arith.mulf %533, %542 : vector<8x44xf32>
    %cst_185 = arith.constant dense<0.000000e+00> : vector<8x40xf32>
    %544 = tpu.matmul %543, %1, %cst_185 {dimension_numbers = #tpu.dot_dimension_numbers<[1], [0], [0], [1], [0, 0, 1, 1], [], []>} : vector<8x44xf32>, vector<44x40xf32>, vector<8x40xf32> -> vector<8x40xf32>
    %545 = vector.broadcast %2 : vector<1x40xf32> to vector<8x40xf32>
    %546 = arith.addf %544, %545 : vector<8x40xf32>
    %cst_186 = arith.constant 5.000000e-01 : f32
    %547 = vector.broadcast %cst_186 : f32 to vector<8x40xf32>
    %548 = arith.mulf %547, %546 : vector<8x40xf32>
    %cst_187 = arith.constant 4.471500e-02 : f32
    %549 = vector.broadcast %cst_187 : f32 to vector<8x40xf32>
    %550 = arith.mulf %549, %546 : vector<8x40xf32>
    %551 = arith.mulf %550, %546 : vector<8x40xf32>
    %552 = arith.mulf %551, %546 : vector<8x40xf32>
    %553 = arith.addf %546, %552 : vector<8x40xf32>
    %cst_188 = arith.constant 0.797884583 : f32
    %554 = vector.broadcast %cst_188 : f32 to vector<8x40xf32>
    %555 = arith.mulf %554, %553 : vector<8x40xf32>
    %556 = math.tanh %555 : vector<8x40xf32>
    %cst_189 = arith.constant 1.000000e+00 : f32
    %557 = vector.broadcast %cst_189 : f32 to vector<8x40xf32>
    %558 = arith.addf %557, %556 : vector<8x40xf32>
    %559 = arith.mulf %548, %558 : vector<8x40xf32>
    %560 = vector.extract_strided_slice %559 {offsets = [0, 0], sizes = [8, 32], strides = [1, 1]} : vector<8x40xf32> to vector<8x32xf32>
    %cst_190 = arith.constant dense<0.000000e+00> : vector<8xf32>
    %561 = vector.multi_reduction <add>, %559, %cst_190 [1] : vector<8x40xf32> to vector<8xf32>
    %562 = vector.shape_cast %561 : vector<8xf32> to vector<8x1xf32>
    %cst_191 = arith.constant 2.500000e-02 : f32
    %563 = vector.broadcast %cst_191 : f32 to vector<8x1xf32>
    %564 = arith.mulf %562, %563 : vector<8x1xf32>
    %565 = vector.broadcast %564 : vector<8x1xf32> to vector<8x40xf32>
    %566 = arith.subf %559, %565 : vector<8x40xf32>
    %567 = arith.mulf %566, %566 : vector<8x40xf32>
    %cst_192 = arith.constant dense<0.000000e+00> : vector<8xf32>
    %568 = vector.multi_reduction <add>, %567, %cst_192 [1] : vector<8x40xf32> to vector<8xf32>
    %569 = vector.shape_cast %568 : vector<8xf32> to vector<8x1xf32>
    %cst_193 = arith.constant 2.500000e-02 : f32
    %570 = vector.broadcast %cst_193 : f32 to vector<8x1xf32>
    %571 = arith.mulf %569, %570 : vector<8x1xf32>
    %cst_194 = arith.constant 9.99999974E-6 : f32
    %572 = vector.broadcast %cst_194 : f32 to vector<8x1xf32>
    %573 = arith.addf %571, %572 : vector<8x1xf32>
    %574 = math.rsqrt %573 : vector<8x1xf32>
    %575 = vector.broadcast %574 : vector<8x1xf32> to vector<8x40xf32>
    %576 = arith.mulf %566, %575 : vector<8x40xf32>
    %cst_195 = arith.constant dense<0.000000e+00> : vector<8x96xf32>
    %577 = tpu.matmul %576, %3, %cst_195 {dimension_numbers = #tpu.dot_dimension_numbers<[1], [0], [0], [1], [0, 0, 1, 1], [], []>} : vector<8x40xf32>, vector<40x96xf32>, vector<8x96xf32> -> vector<8x96xf32>
    %578 = vector.broadcast %4 : vector<1x96xf32> to vector<8x96xf32>
    %579 = arith.addf %577, %578 : vector<8x96xf32>
    %cst_196 = arith.constant 5.000000e-01 : f32
    %580 = vector.broadcast %cst_196 : f32 to vector<8x96xf32>
    %581 = arith.mulf %580, %579 : vector<8x96xf32>
    %cst_197 = arith.constant 4.471500e-02 : f32
    %582 = vector.broadcast %cst_197 : f32 to vector<8x96xf32>
    %583 = arith.mulf %582, %579 : vector<8x96xf32>
    %584 = arith.mulf %583, %579 : vector<8x96xf32>
    %585 = arith.mulf %584, %579 : vector<8x96xf32>
    %586 = arith.addf %579, %585 : vector<8x96xf32>
    %cst_198 = arith.constant 0.797884583 : f32
    %587 = vector.broadcast %cst_198 : f32 to vector<8x96xf32>
    %588 = arith.mulf %587, %586 : vector<8x96xf32>
    %589 = math.tanh %588 : vector<8x96xf32>
    %cst_199 = arith.constant 1.000000e+00 : f32
    %590 = vector.broadcast %cst_199 : f32 to vector<8x96xf32>
    %591 = arith.addf %590, %589 : vector<8x96xf32>
    %592 = arith.mulf %581, %591 : vector<8x96xf32>
    %593 = tpu.concatenate %560, %592 in 1 : vector<8x32xf32>, vector<8x96xf32> -> vector<8x128xf32>
    %594 = arith.index_cast %c7_i32 : i32 to index
    %c0_200 = arith.constant 0 : index
    %c0_201 = arith.constant 0 : index
    %595 = vector.load %arg8[%594, %c0_200, %c0_201] : memref<8x8x128xf32, #tpu.memory_space<vmem>>, vector<1x8x128xf32>
    %596 = vector.shape_cast %595 : vector<1x8x128xf32> to vector<8x128xf32>
    %597 = vector.shape_cast %593 : vector<8x128xf32> to vector<1x8x128xf32>
    tpu.vector_store %arg8[%594, %c0_200, %c0_201], %597 {strides = array<i32>} : memref<8x8x128xf32, #tpu.memory_space<vmem>>, vector<1x8x128xf32>,
    %c8_i32 = arith.constant 8 : i32
    return
  }
  func.func @transform_0(%arg0: i32) -> (i32, i32) {
    %c0_i32 = arith.constant 0 : i32
    %c0_i32_0 = arith.constant 0 : i32
    return %arg0, %c0_i32 : i32, i32
  }
  func.func @transform_1(%arg0: i32) -> (i32, i32) {
    %c0_i32 = arith.constant 0 : i32
    %c0_i32_0 = arith.constant 0 : i32
    return %arg0, %c0_i32 : i32, i32
  }
  func.func @transform_2(%arg0: i32) -> (i32, i32, i32) {
    %c0_i32 = arith.constant 0 : i32
    %c0_i32_0 = arith.constant 0 : i32
    %c0_i32_1 = arith.constant 0 : i32
    return %c0_i32, %arg0, %c0_i32_0 : i32, i32, i32
  }
  func.func @transform_3(%arg0: i32) -> (i32, i32) {
    %c0_i32 = arith.constant 0 : i32
    %c0_i32_0 = arith.constant 0 : i32
    %c0_i32_1 = arith.constant 0 : i32
    return %c0_i32, %c0_i32_0 : i32, i32
  }
  func.func @transform_4(%arg0: i32) -> (i32, i32) {
    %c0_i32 = arith.constant 0 : i32
    %c0_i32_0 = arith.constant 0 : i32
    %c0_i32_1 = arith.constant 0 : i32
    return %c0_i32, %c0_i32_0 : i32, i32
  }
  func.func @transform_5(%arg0: i32) -> (i32, i32) {
    %c0_i32 = arith.constant 0 : i32
    %c0_i32_0 = arith.constant 0 : i32
    %c0_i32_1 = arith.constant 0 : i32
    return %c0_i32, %c0_i32_0 : i32, i32
  }
  func.func @transform_6(%arg0: i32) -> (i32, i32) {
    %c0_i32 = arith.constant 0 : i32
    %c0_i32_0 = arith.constant 0 : i32
    %c0_i32_1 = arith.constant 0 : i32
    return %c0_i32, %c0_i32_0 : i32, i32
  }
  func.func @transform_7(%arg0: i32) -> (i32, i32, i32) {
    %c0_i32 = arith.constant 0 : i32
    %c0_i32_0 = arith.constant 0 : i32
    %c0_i32_1 = arith.constant 0 : i32
    return %c0_i32, %arg0, %c0_i32_0 : i32, i32, i32
  }
}

</mosaic_0001>

<llo_original>
// kernel: tpu_custom_call.1
$region0: #{tpu_custom_call.1}
  #allocation0 [shape = 'u32[]', space=smem, size = 0x4, offset = 0x4, fixed_abs, tag = 'smem constant byte address 0x4 - core index']
  #allocation1 [shape = 'u32[144,128]{1,0:T(1,128)}', space=vmem, size = 0x12000, scoped, tag = 'internal scratch']
  %s0 = inlined_call_operand.vmem [shape: f32[8,4], index: 0, kind: input, shape index: {}]
  %s1 = inlined_call_operand.hbm [shape: f32[8,32], index: 1, kind: input, shape index: {}]
  %s2 = inlined_call_operand.vmem [shape: f32[8,8,8], index: 2, kind: input, shape index: {}]
  %s3 = inlined_call_operand.vmem [shape: f32[44,40], index: 3, kind: input, shape index: {}]
  %s4 = inlined_call_operand.vmem [shape: f32[1,40], index: 4, kind: input, shape index: {}]
  %s5 = inlined_call_operand.vmem [shape: f32[40,96], index: 5, kind: input, shape index: {}]
  %s6 = inlined_call_operand.vmem [shape: f32[1,96], index: 6, kind: input, shape index: {}]
  %s7 = inlined_call_operand.hbm [shape: f32[8,8,128], index: 7, kind: output, shape index: {}]
  %s8 = sld [smem:[#allocation0]]
  $region42: #{tpu_custom_call.1} parent=0
    _
  %s10 = ssub.s32 1, %s8
  %s11 = scalar_select 0, %s10, %s8
  $region1: #{tpu_custom_call.1} parent=0
    #allocation2 [shape = 'u8[4096]{0}', space=vmem, size = 0x1000, scoped, tag = 'input window, operand 1, single buffered']
    #allocation3 [shape = 's32[1]{0}', space=sflag, size = 0x4, scoped, tag = 'scoped memory for tpu_custom_call.1']
    #allocation4 [shape = 's32[1]{0}', space=sflag, size = 0x4, scoped, tag = 'scoped memory for tpu_custom_call.1']
    #allocation5 [shape = 'u8[32768]{0}', space=vmem, size = 0x8000, scoped, tag = 'output window, operand 0, single buffered']
    %12 = vsyncpa [#allocation3], 0
    %13 = vsyncpa [#allocation4], 0
    // Predicated region
    $region2: #{tpu_custom_call.1} parent=1 // pred_check
      _
    $region3: #{tpu_custom_call.1} parent=1 // pred_check_branch
      %15 = sbr.rel (0) target = $region5
    $region4: #{tpu_custom_call.1} parent=1 // pred_region
      _
    $region5: #{tpu_custom_call.1} parent=1 // pred_fallthru
      _
    // Predicated region
    $region6: #{tpu_custom_call.1} parent=1 // pred_check
      _
    $region7: #{tpu_custom_call.1} parent=1 // pred_check_branch
      %17 = sbr.rel (0) target = $region9
    $region8: #{tpu_custom_call.1} parent=1 // pred_region
      %s19 = ssub.s32 128, 128
      %20 = vsyncadd [#allocation3], %s19
      %s22 = sshll.u32 [#allocation2], 4
      %s23 = int_to_ptr.vmem [resolvable:$true] %s22
      %25 = dma.hbm_to_vmem [thread:$0]  %s1, 128, %s23, [#allocation3]
    $region9: #{tpu_custom_call.1} parent=1 // pred_fallthru
      _
    // Predicated region
    $region10: #{tpu_custom_call.1} parent=1 // pred_check
      _
    $region11: #{tpu_custom_call.1} parent=1 // pred_check_branch
      %27 = sbr.rel (0) target = $region13
    $region12: #{tpu_custom_call.1} parent=1 // pred_region
      _
    $region13: #{tpu_custom_call.1} parent=1 // pred_fallthru
      _
    // Predicated region
    $region14: #{tpu_custom_call.1} parent=1 // pred_check
      _
    $region15: #{tpu_custom_call.1} parent=1 // pred_check_branch
      %29 = sbr.rel (0) target = $region17
    $region16: #{tpu_custom_call.1} parent=1 // pred_region
      _
    $region17: #{tpu_custom_call.1} parent=1 // pred_fallthru
      _
    // Predicated region
    $region18: #{tpu_custom_call.1} parent=1 // pred_check
      _
    $region19: #{tpu_custom_call.1} parent=1 // pred_check_branch
      %31 = sbr.rel (0) target = $region21
    $region20: #{tpu_custom_call.1} parent=1 // pred_region
      _
    $region21: #{tpu_custom_call.1} parent=1 // pred_fallthru
      _
    // Predicated region
    $region22: #{tpu_custom_call.1} parent=1 // pred_check
      _
    $region23: #{tpu_custom_call.1} parent=1 // pred_check_branch
      %33 = sbr.rel (0) target = $region25
    $region24: #{tpu_custom_call.1} parent=1 // pred_region
      _
    $region25: #{tpu_custom_call.1} parent=1 // pred_fallthru
      _
    // Predicated region
    $region26: #{tpu_custom_call.1} parent=1 // pred_check
      _
    $region27: #{tpu_custom_call.1} parent=1 // pred_check_branch
      %35 = sbr.rel (0) target = $region29
    $region28: #{tpu_custom_call.1} parent=1 // pred_region
      _
    $region29: #{tpu_custom_call.1} parent=1 // pred_fallthru
      _
    // Predicated region
    $region30: #{tpu_custom_call.1} parent=1 // pred_check
      _
    $region31: #{tpu_custom_call.1} parent=1 // pred_check_branch
      %37 = sbr.rel (0) target = $region33
    $region32: #{tpu_custom_call.1} parent=1 // pred_region
      %38 = dma.done [#allocation3], 128
    $region33: #{tpu_custom_call.1} parent=1 // pred_fallthru
      _
    %v39 = vld [vmem:[%s0] sm:$0xff]
    %v40 = vld [vmem:[%s3] sm:$0xff]
    %v41 = vld [vmem:[%s3 + $0x8] sm:$0xff]
    %v42 = vld [vmem:[%s3 + $0x10] sm:$0xff]
    %v43 = vld [vmem:[%s3 + $0x18] sm:$0xff]
    %v44 = vld [vmem:[%s3 + $0x20] sm:$0xff]
    %v45 = vld [vmem:[%s3 + $0x28] sm:$0xf]
    %v46 = vld [vmem:[%s4] sm:$0x1]
    %v47 = vld [vmem:[%s5] sm:$0xff]
    %v48 = vld [vmem:[%s5 + $0x8] sm:$0xff]
    %v49 = vld [vmem:[%s5 + $0x10] sm:$0xff]
    %v50 = vld [vmem:[%s5 + $0x18] sm:$0xff]
    %v51 = vld [vmem:[%s5 + $0x20] sm:$0xff]
    %v52 = vld [vmem:[%s6] sm:$0x1]
    %v53 = vld [vmem:[#allocation2] sm:$0xff]
    %v54 = vld [vmem:[%s2] sm:$0xff]
    %56 = vrot.lane.b32.xlu0 %v54, 4
    %v57 = vpop.permute.xlu0 %56
    %60 = vrot.lane.b32.xlu0 %v53, 12
    %v61 = vpop.permute.xlu0 %60
    %vm63 = vcmask 31744
    %v64 = vsel %vm63, %v39, %v57
    %vm65 = vcmask 97280
    %v66 = vsel %vm65, %v64, %v61
    %vm67 = vcmask 359424
    %v68 = vsel %vm67, %v66, 0.0
    %69 = vadd.xlane.f32.xlu0 %v68
    %v70 = vpop.xlane.xlu0 %69
    %v71 = vmul.f32 %v70, 0.022727273
    %v72 = vsub.f32 %v66, %v71
    %v73 = vmul.f32 %v72, %v72
    %v74 = vsel %vm67, %v73, 0.0
    %75 = vadd.xlane.f32.xlu0 %v74
    %v76 = vpop.xlane.xlu0 %75
    %v77 = vmul.f32 %v76, 0.022727273
    %v78 = vadd.f32 %v77, 1e-05
    %v79 = vrsqrt.pop %v78
    %v80 = vmul.f32 %v72, %v79
    %v82 = vlaneseq
    %v83 = vshrl.u32 %v82, 7
    %v84 = vsub.s32 0, %v83
    %v85 = vrot.slane %v46, %v84
    %v88 = vsel %vm67, %v80, 0
    %vm90 = vcmask 1043456
    %v92 = vsel %vm90, %v45, 0
    %94 = vmatprep.subr.mxu0 0.0
    %95 = vmatpush1.msra.mxu0 %v40
    %96 = vmatprep.subr.mxu0 0.0
    %97 = vmatpush1.msra.mxu0 %v41
    %98 = vmatprep.subr.mxu0 0.0
    %99 = vmatpush1.msra.mxu0 %v42
    %100 = vmatprep.subr.mxu0 0.0
    %101 = vmatpush1.msra.mxu0 %v43
    %102 = vmatprep.subr.mxu0 0.0
    %103 = vmatpush1.msra.mxu0 %v44
    %104 = vmatprep.subr.mxu0 0.0
    %105 = vmatpush1.msra.mxu0 %v92
    %106 = vmatprep.subr.mxu0 0.0
    %107 = vmatpush1.msra.mxu0 0.0
    %108 = vmatprep.subr.mxu0 0.0
    %109 = vmatpush1.msra.mxu0 0.0
    %110 = vmatprep.subr.mxu0 0.0
    %111 = vmatpush1.msra.mxu0 0.0
    %112 = vmatprep.subr.mxu0 0.0
    %113 = vmatpush1.msra.mxu0 0.0
    %114 = vmatprep.subr.mxu0 0.0
    %115 = vmatpush1.msra.mxu0 0.0
    %116 = vmatprep.subr.mxu0 0.0
    %117 = vmatpush1.msra.mxu0 0.0
    %118 = vmatprep.subr.mxu0 0.0
    %119 = vmatpush1.msra.mxu0 0.0
    %120 = vmatprep.subr.mxu0 0.0
    %121 = vmatpush1.msra.mxu0 0.0
    %122 = vmatprep.subr.mxu0 0.0
    %123 = vmatpush1.msra.mxu0 0.0
    %124 = vmatprep.subr.mxu0 0.0
    %125 = vmatpush1.msra.mxu0 0.0
    %126 = vmatprep.subr.mxu0 0.0
    %127 = vmatpush1.msra.mxu0 0.0
    %128 = vmatprep.subr.mxu0 0.0
    %129 = vmatpush1.msra.mxu0 0.0
    %130 = vmatprep.subr.mxu0 0.0
    %131 = vmatpush1.msra.mxu0 0.0
    %132 = vmatprep.subr.mxu0 0.0
    %133 = vmatpush1.msra.mxu0 0.0
    %134 = vmatprep.subr.mxu0 0.0
    %135 = vmatpush1.msra.mxu0 0.0
    %136 = vmatprep.subr.mxu0 0.0
    %137 = vmatpush1.msra.mxu0 0.0
    %138 = vmatprep.subr.mxu0 0.0
    %139 = vmatpush1.msra.mxu0 0.0
    %140 = vmatprep.subr.mxu0 0.0
    %141 = vmatpush1.msra.mxu0 0.0
    %142 = vmatprep.subr.mxu0 0.0
    %143 = vmatpush1.msra.mxu0 0.0
    %144 = vmatprep.subr.mxu0 0.0
    %145 = vmatpush1.msra.mxu0 0.0
    %146 = vmatprep.subr.mxu0 0.0
    %147 = vmatpush1.msra.mxu0 0.0
    %148 = vmatprep.subr.mxu0 0.0
    %149 = vmatpush1.msra.mxu0 0.0
    %150 = vmatprep.subr.mxu0 0.0
    %151 = vmatpush1.msra.mxu0 0.0
    %152 = vmatprep.subr.mxu0 0.0
    %153 = vmatpush1.msra.mxu0 0.0
    %154 = vmatprep.subr.mxu0 0.0
    %155 = vmatpush1.msra.mxu0 0.0
    %156 = vmatprep.subr.mxu0 0.0
    %157 = vmatpush1.msra.mxu0 0.0
    %158 = vmatprep.mubr.f32.mxu0 0.0
    %159 = vmatmul.mubr.f32.gmra.mrb[0].mxu0 %v88
    %v160 = vpop.f32.mrb[0].mxu0
    %v161 = vadd.f32 %v85, %v160
    %v162 = vpop.f32.mrb[0].mxu0
    %163 = vdwg.mxu0
    %v164 = vmul.f32 %v161, 0.5
    %v165 = vmul.f32 %v161, 0.044715
    %v166 = vmul.f32 %v165, %v161
    %v167 = vmul.f32 %v166, %v161
    %v168 = vadd.f32 %v161, %v167
    %v169 = vmul.f32 %v168, 0.7978846
    %v170 = vtanh.pop %v169
    %v171 = vadd.f32 %v170, 1.0
    %v172 = vmul.f32 %v164, %v171
    %vm173 = vcmask 326656
    %v174 = vsel %vm173, %v172, 0.0
    %175 = vadd.xlane.f32.xlu0 %v174
    %v176 = vpop.xlane.xlu0 %175
    %v177 = vmul.f32 %v176, 0.025
    %v178 = vsub.f32 %v172, %v177
    %v179 = vmul.f32 %v178, %v178
    %v180 = vsel %vm173, %v179, 0.0
    %181 = vadd.xlane.f32.xlu0 %v180
    %v182 = vpop.xlane.xlu0 %181
    %v183 = vmul.f32 %v182, 0.025
    %v184 = vadd.f32 %v183, 1e-05
    %v185 = vrsqrt.pop %v184
    %v186 = vmul.f32 %v178, %v185
    %v188 = vlaneseq
    %v189 = vshrl.u32 %v188, 7
    %v190 = vsub.s32 0, %v189
    %v191 = vrot.slane %v52, %v190
    %v194 = vsel %vm173, %v186, 0
    %196 = vmatprep.subr.mxu0 0.0
    %197 = vmatpush1.msra.mxu0 %v47
    %198 = vmatprep.subr.mxu0 0.0
    %199 = vmatpush1.msra.mxu0 %v48
    %200 = vmatprep.subr.mxu0 0.0
    %201 = vmatpush1.msra.mxu0 %v49
    %202 = vmatprep.subr.mxu0 0.0
    %203 = vmatpush1.msra.mxu0 %v50
    %204 = vmatprep.subr.mxu0 0.0
    %205 = vmatpush1.msra.mxu0 %v51
    %206 = vmatprep.subr.mxu0 0.0
    %207 = vmatpush1.msra.mxu0 0.0
    %208 = vmatprep.subr.mxu0 0.0
    %209 = vmatpush1.msra.mxu0 0.0
    %210 = vmatprep.subr.mxu0 0.0
    %211 = vmatpush1.msra.mxu0 0.0
    %212 = vmatprep.subr.mxu0 0.0
    %213 = vmatpush1.msra.mxu0 0.0
    %214 = vmatprep.subr.mxu0 0.0
    %215 = vmatpush1.msra.mxu0 0.0
    %216 = vmatprep.subr.mxu0 0.0
    %217 = vmatpush1.msra.mxu0 0.0
    %218 = vmatprep.subr.mxu0 0.0
    %219 = vmatpush1.msra.mxu0 0.0
    %220 = vmatprep.subr.mxu0 0.0
    %221 = vmatpush1.msra.mxu0 0.0
    %222 = vmatprep.subr.mxu0 0.0
    %223 = vmatpush1.msra.mxu0 0.0
    %224 = vmatprep.subr.mxu0 0.0
    %225 = vmatpush1.msra.mxu0 0.0
    %226 = vmatprep.subr.mxu0 0.0
    %227 = vmatpush1.msra.mxu0 0.0
    %228 = vmatprep.subr.mxu0 0.0
    %229 = vmatpush1.msra.mxu0 0.0
    %230 = vmatprep.subr.mxu0 0.0
    %231 = vmatpush1.msra.mxu0 0.0
    %232 = vmatprep.subr.mxu0 0.0
    %233 = vmatpush1.msra.mxu0 0.0
    %234 = vmatprep.subr.mxu0 0.0
    %235 = vmatpush1.msra.mxu0 0.0
    %236 = vmatprep.subr.mxu0 0.0
    %237 = vmatpush1.msra.mxu0 0.0
    %238 = vmatprep.subr.mxu0 0.0
    %239 = vmatpush1.msra.mxu0 0.0
    %240 = vmatprep.subr.mxu0 0.0
    %241 = vmatpush1.msra.mxu0 0.0
    %242 = vmatprep.subr.mxu0 0.0
    %243 = vmatpush1.msra.mxu0 0.0
    %244 = vmatprep.subr.mxu0 0.0
    %245 = vmatpush1.msra.mxu0 0.0
    %246 = vmatprep.subr.mxu0 0.0
    %247 = vmatpush1.msra.mxu0 0.0
    %248 = vmatprep.subr.mxu0 0.0
    %249 = vmatpush1.msra.mxu0 0.0
    %250 = vmatprep.subr.mxu0 0.0
    %251 = vmatpush1.msra.mxu0 0.0
    %252 = vmatprep.subr.mxu0 0.0
    %253 = vmatpush1.msra.mxu0 0.0
    %254 = vmatprep.subr.mxu0 0.0
    %255 = vmatpush1.msra.mxu0 0.0
    %256 = vmatprep.subr.mxu0 0.0
    %257 = vmatpush1.msra.mxu0 0.0
    %258 = vmatprep.subr.mxu0 0.0
    %259 = vmatpush1.msra.mxu0 0.0
    %260 = vmatprep.mubr.f32.mxu0 0.0
    %261 = vmatmul.mubr.f32.gmra.mrb[0].mxu0 %v194
    %v262 = vpop.f32.mrb[0].mxu0
    %v263 = vadd.f32 %v191, %v262
    %v264 = vpop.f32.mrb[0].mxu0
    %265 = vdwg.mxu0
    %v266 = vmul.f32 %v263, 0.5
    %v267 = vmul.f32 %v263, 0.044715
    %v268 = vmul.f32 %v267, %v263
    %v269 = vmul.f32 %v268, %v263
    %v270 = vadd.f32 %v263, %v269
    %v271 = vmul.f32 %v270, 0.7978846
    %v272 = vtanh.pop %v271
    %v273 = vadd.f32 %v272, 1.0
    %v274 = vmul.f32 %v266, %v273
    %276 = vrot.lane.b32.xlu0 %v274, 32
    %v277 = vpop.permute.xlu0 %276
    %vm279 = vcmask 261120
    %v280 = vsel %vm279, %v172, %v277
    %281 = vst [vmem:[#allocation5] sm:$0xff] %v280
    %s282 = scalar_lea.vmem %s2, 8
    %v283 = vld [vmem:[%s282] sm:$0xff]
    %285 = vrot.lane.b32.xlu0 %v283, 4
    %v286 = vpop.permute.xlu0 %285
    %289 = vrot.lane.b32.xlu0 %v172, 12
    %v290 = vpop.permute.xlu0 %289
    %v292 = vsel %vm63, %v39, %v286
    %v293 = vsel %vm65, %v292, %v290
    %v294 = vsel %vm67, %v293, 0.0
    %295 = vadd.xlane.f32.xlu0 %v294
    %v296 = vpop.xlane.xlu0 %295
    %v297 = vmul.f32 %v296, 0.022727273
    %v298 = vsub.f32 %v293, %v297
    %v299 = vmul.f32 %v298, %v298
    %v300 = vsel %vm67, %v299, 0.0
    %301 = vadd.xlane.f32.xlu0 %v300
    %v302 = vpop.xlane.xlu0 %301
    %v303 = vmul.f32 %v302, 0.022727273
    %v304 = vadd.f32 %v303, 1e-05
    %v305 = vrsqrt.pop %v304
    %v306 = vmul.f32 %v298, %v305
    %v308 = vsel %vm67, %v306, 0
    %310 = vmatprep.subr.mxu0 0.0
    %311 = vmatpush1.msra.mxu0 %v40
    %312 = vmatprep.subr.mxu0 0.0
    %313 = vmatpush1.msra.mxu0 %v41
    %314 = vmatprep.subr.mxu0 0.0
    %315 = vmatpush1.msra.mxu0 %v42
    %316 = vmatprep.subr.mxu0 0.0
    %317 = vmatpush1.msra.mxu0 %v43
    %318 = vmatprep.subr.mxu0 0.0
    %319 = vmatpush1.msra.mxu0 %v44
    %320 = vmatprep.subr.mxu0 0.0
    %321 = vmatpush1.msra.mxu0 %v92
    %322 = vmatprep.subr.mxu0 0.0
    %323 = vmatpush1.msra.mxu0 0.0
    %324 = vmatprep.subr.mxu0 0.0
    %325 = vmatpush1.msra.mxu0 0.0
    %326 = vmatprep.subr.mxu0 0.0
    %327 = vmatpush1.msra.mxu0 0.0
    %328 = vmatprep.subr.mxu0 0.0
    %329 = vmatpush1.msra.mxu0 0.0
    %330 = vmatprep.subr.mxu0 0.0
    %331 = vmatpush1.msra.mxu0 0.0
    %332 = vmatprep.subr.mxu0 0.0
    %333 = vmatpush1.msra.mxu0 0.0
    %334 = vmatprep.subr.mxu0 0.0
    %335 = vmatpush1.msra.mxu0 0.0
    %336 = vmatprep.subr.mxu0 0.0
    %337 = vmatpush1.msra.mxu0 0.0
    %338 = vmatprep.subr.mxu0 0.0
    %339 = vmatpush1.msra.mxu0 0.0
    %340 = vmatprep.subr.mxu0 0.0
    %341 = vmatpush1.msra.mxu0 0.0
    %342 = vmatprep.subr.mxu0 0.0
    %343 = vmatpush1.msra.mxu0 0.0
    %344 = vmatprep.subr.mxu0 0.0
    %345 = vmatpush1.msra.mxu0 0.0
    %346 = vmatprep.subr.mxu0 0.0
    %347 = vmatpush1.msra.mxu0 0.0
    %348 = vmatprep.subr.mxu0 0.0
    %349 = vmatpush1.msra.mxu0 0.0
    %350 = vmatprep.subr.mxu0 0.0
    %351 = vmatpush1.msra.mxu0 0.0
    %352 = vmatprep.subr.mxu0 0.0
    %353 = vmatpush1.msra.mxu0 0.0
    %354 = vmatprep.subr.mxu0 0.0
    %355 = vmatpush1.msra.mxu0 0.0
    %356 = vmatprep.subr.mxu0 0.0
    %357 = vmatpush1.msra.mxu0 0.0
    %358 = vmatprep.subr.mxu0 0.0
    %359 = vmatpush1.msra.mxu0 0.0
    %360 = vmatprep.subr.mxu0 0.0
    %361 = vmatpush1.msra.mxu0 0.0
    %362 = vmatprep.subr.mxu0 0.0
    %363 = vmatpush1.msra.mxu0 0.0
    %364 = vmatprep.subr.mxu0 0.0
    %365 = vmatpush1.msra.mxu0 0.0
    %366 = vmatprep.subr.mxu0 0.0
    %367 = vmatpush1.msra.mxu0 0.0
    %368 = vmatprep.subr.mxu0 0.0
    %369 = vmatpush1.msra.mxu0 0.0
    %370 = vmatprep.subr.mxu0 0.0
    %371 = vmatpush1.msra.mxu0 0.0
    %372 = vmatprep.subr.mxu0 0.0
    %373 = vmatpush1.msra.mxu0 0.0
    %374 = vmatprep.mubr.f32.mxu0 0.0
    %375 = vmatmul.mubr.f32.gmra.mrb[0].mxu0 %v308
    %v376 = vpop.f32.mrb[0].mxu0
    %v377 = vadd.f32 %v85, %v376
    %v378 = vpop.f32.mrb[0].mxu0
    %379 = vdwg.mxu0
    %v380 = vmul.f32 %v377, 0.5
    %v381 = vmul.f32 %v377, 0.044715
    %v382 = vmul.f32 %v381, %v377
    %v383 = vmul.f32 %v382, %v377
    %v384 = vadd.f32 %v377, %v383
    %v385 = vmul.f32 %v384, 0.7978846
    %v386 = vtanh.pop %v385
    %v387 = vadd.f32 %v386, 1.0
    %v388 = vmul.f32 %v380, %v387
    %v389 = vsel %vm173, %v388, 0.0
    %390 = vadd.xlane.f32.xlu0 %v389
    %v391 = vpop.xlane.xlu0 %390
    %v392 = vmul.f32 %v391, 0.025
    %v393 = vsub.f32 %v388, %v392
    %v394 = vmul.f32 %v393, %v393
    %v395 = vsel %vm173, %v394, 0.0
    %396 = vadd.xlane.f32.xlu0 %v395
    %v397 = vpop.xlane.xlu0 %396
    %v398 = vmul.f32 %v397, 0.025
    %v399 = vadd.f32 %v398, 1e-05
    %v400 = vrsqrt.pop %v399
    %v401 = vmul.f32 %v393, %v400
    %v403 = vsel %vm173, %v401, 0
    %405 = vmatprep.subr.mxu0 0.0
    %406 = vmatpush1.msra.mxu0 %v47
    %407 = vmatprep.subr.mxu0 0.0
    %408 = vmatpush1.msra.mxu0 %v48
    %409 = vmatprep.subr.mxu0 0.0
    %410 = vmatpush1.msra.mxu0 %v49
    %411 = vmatprep.subr.mxu0 0.0
    %412 = vmatpush1.msra.mxu0 %v50
    %413 = vmatprep.subr.mxu0 0.0
    %414 = vmatpush1.msra.mxu0 %v51
    %415 = vmatprep.subr.mxu0 0.0
    %416 = vmatpush1.msra.mxu0 0.0
    %417 = vmatprep.subr.mxu0 0.0
    %418 = vmatpush1.msra.mxu0 0.0
    %419 = vmatprep.subr.mxu0 0.0
    %420 = vmatpush1.msra.mxu0 0.0
    %421 = vmatprep.subr.mxu0 0.0
    %422 = vmatpush1.msra.mxu0 0.0
    %423 = vmatprep.subr.mxu0 0.0
    %424 = vmatpush1.msra.mxu0 0.0
    %425 = vmatprep.subr.mxu0 0.0
    %426 = vmatpush1.msra.mxu0 0.0
    %427 = vmatprep.subr.mxu0 0.0
    %428 = vmatpush1.msra.mxu0 0.0
    %429 = vmatprep.subr.mxu0 0.0
    %430 = vmatpush1.msra.mxu0 0.0
    %431 = vmatprep.subr.mxu0 0.0
    %432 = vmatpush1.msra.mxu0 0.0
    %433 = vmatprep.subr.mxu0 0.0
    %434 = vmatpush1.msra.mxu0 0.0
    %435 = vmatprep.subr.mxu0 0.0
    %436 = vmatpush1.msra.mxu0 0.0
    %437 = vmatprep.subr.mxu0 0.0
    %438 = vmatpush1.msra.mxu0 0.0
    %439 = vmatprep.subr.mxu0 0.0
    %440 = vmatpush1.msra.mxu0 0.0
    %441 = vmatprep.subr.mxu0 0.0
    %442 = vmatpush1.msra.mxu0 0.0
    %443 = vmatprep.subr.mxu0 0.0
    %444 = vmatpush1.msra.mxu0 0.0
    %445 = vmatprep.subr.mxu0 0.0
    %446 = vmatpush1.msra.mxu0 0.0
    %447 = vmatprep.subr.mxu0 0.0
    %448 = vmatpush1.msra.mxu0 0.0
    %449 = vmatprep.subr.mxu0 0.0
    %450 = vmatpush1.msra.mxu0 0.0
    %451 = vmatprep.subr.mxu0 0.0
    %452 = vmatpush1.msra.mxu0 0.0
    %453 = vmatprep.subr.mxu0 0.0
    %454 = vmatpush1.msra.mxu0 0.0
    %455 = vmatprep.subr.mxu0 0.0
    %456 = vmatpush1.msra.mxu0 0.0
    %457 = vmatprep.subr.mxu0 0.0
    %458 = vmatpush1.msra.mxu0 0.0
    %459 = vmatprep.subr.mxu0 0.0
    %460 = vmatpush1.msra.mxu0 0.0
    %461 = vmatprep.subr.mxu0 0.0
    %462 = vmatpush1.msra.mxu0 0.0
    %463 = vmatprep.subr.mxu0 0.0
    %464 = vmatpush1.msra.mxu0 0.0
    %465 = vmatprep.subr.mxu0 0.0
    %466 = vmatpush1.msra.mxu0 0.0
    %467 = vmatprep.subr.mxu0 0.0
    %468 = vmatpush1.msra.mxu0 0.0
    %469 = vmatprep.mubr.f32.mxu0 0.0
    %470 = vmatmul.mubr.f32.gmra.mrb[0].mxu0 %v403
    %v471 = vpop.f32.mrb[0].mxu0
    %v472 = vadd.f32 %v191, %v471
    %v473 = vpop.f32.mrb[0].mxu0
    %474 = vdwg.mxu0
    %v475 = vmul.f32 %v472, 0.5
    %v476 = vmul.f32 %v472, 0.044715
    %v477 = vmul.f32 %v476, %v472
    %v478 = vmul.f32 %v477, %v472
    %v479 = vadd.f32 %v472, %v478
    %v480 = vmul.f32 %v479, 0.7978846
    %v481 = vtanh.pop %v480
    %v482 = vadd.f32 %v481, 1.0
    %v483 = vmul.f32 %v475, %v482
    %485 = vrot.lane.b32.xlu0 %v483, 32
    %v486 = vpop.permute.xlu0 %485
    %v488 = vsel %vm279, %v388, %v486
    %s489 = scalar_lea.vmem [#allocation5], 8
    %490 = vst [vmem:[%s489] sm:$0xff] %v488
    %s491 = scalar_lea.vmem %s2, 16
    %v492 = vld [vmem:[%s491] sm:$0xff]
    %494 = vrot.lane.b32.xlu0 %v492, 4
    %v495 = vpop.permute.xlu0 %494
    %498 = vrot.lane.b32.xlu0 %v388, 12
    %v499 = vpop.permute.xlu0 %498
    %v501 = vsel %vm63, %v39, %v495
    %v502 = vsel %vm65, %v501, %v499
    %v503 = vsel %vm67, %v502, 0.0
    %504 = vadd.xlane.f32.xlu0 %v503
    %v505 = vpop.xlane.xlu0 %504
    %v506 = vmul.f32 %v505, 0.022727273
    %v507 = vsub.f32 %v502, %v506
    %v508 = vmul.f32 %v507, %v507
    %v509 = vsel %vm67, %v508, 0.0
    %510 = vadd.xlane.f32.xlu0 %v509
    %v511 = vpop.xlane.xlu0 %510
    %v512 = vmul.f32 %v511, 0.022727273
    %v513 = vadd.f32 %v512, 1e-05
    %v514 = vrsqrt.pop %v513
    %v515 = vmul.f32 %v507, %v514
    %v517 = vsel %vm67, %v515, 0
    %519 = vmatprep.subr.mxu0 0.0
    %520 = vmatpush1.msra.mxu0 %v40
    %521 = vmatprep.subr.mxu0 0.0
    %522 = vmatpush1.msra.mxu0 %v41
    %523 = vmatprep.subr.mxu0 0.0
    %524 = vmatpush1.msra.mxu0 %v42
    %525 = vmatprep.subr.mxu0 0.0
    %526 = vmatpush1.msra.mxu0 %v43
    %527 = vmatprep.subr.mxu0 0.0
    %528 = vmatpush1.msra.mxu0 %v44
    %529 = vmatprep.subr.mxu0 0.0
    %530 = vmatpush1.msra.mxu0 %v92
    %531 = vmatprep.subr.mxu0 0.0
    %532 = vmatpush1.msra.mxu0 0.0
    %533 = vmatprep.subr.mxu0 0.0
    %534 = vmatpush1.msra.mxu0 0.0
    %535 = vmatprep.subr.mxu0 0.0
    %536 = vmatpush1.msra.mxu0 0.0
    %537 = vmatprep.subr.mxu0 0.0
    %538 = vmatpush1.msra.mxu0 0.0
    %539 = vmatprep.subr.mxu0 0.0
    %540 = vmatpush1.msra.mxu0 0.0
    %541 = vmatprep.subr.mxu0 0.0
    %542 = vmatpush1.msra.mxu0 0.0
    %543 = vmatprep.subr.mxu0 0.0
    %544 = vmatpush1.msra.mxu0 0.0
    %545 = vmatprep.subr.mxu0 0.0
    %546 = vmatpush1.msra.mxu0 0.0
    %547 = vmatprep.subr.mxu0 0.0
    %548 = vmatpush1.msra.mxu0 0.0
    %549 = vmatprep.subr.mxu0 0.0
    %550 = vmatpush1.msra.mxu0 0.0
    %551 = vmatprep.subr.mxu0 0.0
    %552 = vmatpush1.msra.mxu0 0.0
    %553 = vmatprep.subr.mxu0 0.0
    %554 = vmatpush1.msra.mxu0 0.0
    %555 = vmatprep.subr.mxu0 0.0
    %556 = vmatpush1.msra.mxu0 0.0
    %557 = vmatprep.subr.mxu0 0.0
    %558 = vmatpush1.msra.mxu0 0.0
    %559 = vmatprep.subr.mxu0 0.0
    %560 = vmatpush1.msra.mxu0 0.0
    %561 = vmatprep.subr.mxu0 0.0
    %562 = vmatpush1.msra.mxu0 0.0
    %563 = vmatprep.subr.mxu0 0.0
    %564 = vmatpush1.msra.mxu0 0.0
    %565 = vmatprep.subr.mxu0 0.0
    %566 = vmatpush1.msra.mxu0 0.0
    %567 = vmatprep.subr.mxu0 0.0
    %568 = vmatpush1.msra.mxu0 0.0
    %569 = vmatprep.subr.mxu0 0.0
    %570 = vmatpush1.msra.mxu0 0.0
    %571 = vmatprep.subr.mxu0 0.0
    %572 = vmatpush1.msra.mxu0 0.0
    %573 = vmatprep.subr.mxu0 0.0
    %574 = vmatpush1.msra.mxu0 0.0
    %575 = vmatprep.subr.mxu0 0.0
    %576 = vmatpush1.msra.mxu0 0.0
    %577 = vmatprep.subr.mxu0 0.0
    %578 = vmatpush1.msra.mxu0 0.0
    %579 = vmatprep.subr.mxu0 0.0
    %580 = vmatpush1.msra.mxu0 0.0
    %581 = vmatprep.subr.mxu0 0.0
    %582 = vmatpush1.msra.mxu0 0.0
    %583 = vmatprep.mubr.f32.mxu0 0.0
    %584 = vmatmul.mubr.f32.gmra.mrb[0].mxu0 %v517
    %v585 = vpop.f32.mrb[0].mxu0
    %v586 = vadd.f32 %v85, %v585
    %v587 = vpop.f32.mrb[0].mxu0
    %588 = vdwg.mxu0
    %v589 = vmul.f32 %v586, 0.5
    %v590 = vmul.f32 %v586, 0.044715
    %v591 = vmul.f32 %v590, %v586
    %v592 = vmul.f32 %v591, %v586
    %v593 = vadd.f32 %v586, %v592
    %v594 = vmul.f32 %v593, 0.7978846
    %v595 = vtanh.pop %v594
    %v596 = vadd.f32 %v595, 1.0
    %v597 = vmul.f32 %v589, %v596
    %v598 = vsel %vm173, %v597, 0.0
    %599 = vadd.xlane.f32.xlu0 %v598
    %v600 = vpop.xlane.xlu0 %599
    %v601 = vmul.f32 %v600, 0.025
    %v602 = vsub.f32 %v597, %v601
    %v603 = vmul.f32 %v602, %v602
    %v604 = vsel %vm173, %v603, 0.0
    %605 = vadd.xlane.f32.xlu0 %v604
    %v606 = vpop.xlane.xlu0 %605
    %v607 = vmul.f32 %v606, 0.025
    %v608 = vadd.f32 %v607, 1e-05
    %v609 = vrsqrt.pop %v608
    %v610 = vmul.f32 %v602, %v609
    %v612 = vsel %vm173, %v610, 0
    %614 = vmatprep.subr.mxu0 0.0
    %615 = vmatpush1.msra.mxu0 %v47
    %616 = vmatprep.subr.mxu0 0.0
    %617 = vmatpush1.msra.mxu0 %v48
    %618 = vmatprep.subr.mxu0 0.0
    %619 = vmatpush1.msra.mxu0 %v49
    %620 = vmatprep.subr.mxu0 0.0
    %621 = vmatpush1.msra.mxu0 %v50
    %622 = vmatprep.subr.mxu0 0.0
    %623 = vmatpush1.msra.mxu0 %v51
    %624 = vmatprep.subr.mxu0 0.0
    %625 = vmatpush1.msra.mxu0 0.0
    %626 = vmatprep.subr.mxu0 0.0
    %627 = vmatpush1.msra.mxu0 0.0
    %628 = vmatprep.subr.mxu0 0.0
    %629 = vmatpush1.msra.mxu0 0.0
    %630 = vmatprep.subr.mxu0 0.0
    %631 = vmatpush1.msra.mxu0 0.0
    %632 = vmatprep.subr.mxu0 0.0
    %633 = vmatpush1.msra.mxu0 0.0
    %634 = vmatprep.subr.mxu0 0.0
    %635 = vmatpush1.msra.mxu0 0.0
    %636 = vmatprep.subr.mxu0 0.0
    %637 = vmatpush1.msra.mxu0 0.0
    %638 = vmatprep.subr.mxu0 0.0
    %639 = vmatpush1.msra.mxu0 0.0
    %640 = vmatprep.subr.mxu0 0.0
    %641 = vmatpush1.msra.mxu0 0.0
    %642 = vmatprep.subr.mxu0 0.0
    %643 = vmatpush1.msra.mxu0 0.0
    %644 = vmatprep.subr.mxu0 0.0
    %645 = vmatpush1.msra.mxu0 0.0
    %646 = vmatprep.subr.mxu0 0.0
    %647 = vmatpush1.msra.mxu0 0.0
    %648 = vmatprep.subr.mxu0 0.0
    %649 = vmatpush1.msra.mxu0 0.0
    %650 = vmatprep.subr.mxu0 0.0
    %651 = vmatpush1.msra.mxu0 0.0
    %652 = vmatprep.subr.mxu0 0.0
    %653 = vmatpush1.msra.mxu0 0.0
    %654 = vmatprep.subr.mxu0 0.0
    %655 = vmatpush1.msra.mxu0 0.0
    %656 = vmatprep.subr.mxu0 0.0
    %657 = vmatpush1.msra.mxu0 0.0
    %658 = vmatprep.subr.mxu0 0.0
    %659 = vmatpush1.msra.mxu0 0.0
    %660 = vmatprep.subr.mxu0 0.0
    %661 = vmatpush1.msra.mxu0 0.0
    %662 = vmatprep.subr.mxu0 0.0
    %663 = vmatpush1.msra.mxu0 0.0
    %664 = vmatprep.subr.mxu0 0.0
    %665 = vmatpush1.msra.mxu0 0.0
    %666 = vmatprep.subr.mxu0 0.0
    %667 = vmatpush1.msra.mxu0 0.0
    %668 = vmatprep.subr.mxu0 0.0
    %669 = vmatpush1.msra.mxu0 0.0
    %670 = vmatprep.subr.mxu0 0.0
    %671 = vmatpush1.msra.mxu0 0.0
    %672 = vmatprep.subr.mxu0 0.0
    %673 = vmatpush1.msra.mxu0 0.0
    %674 = vmatprep.subr.mxu0 0.0
    %675 = vmatpush1.msra.mxu0 0.0
    %676 = vmatprep.subr.mxu0 0.0
    %677 = vmatpush1.msra.mxu0 0.0
    %678 = vmatprep.mubr.f32.mxu0 0.0
    %679 = vmatmul.mubr.f32.gmra.mrb[0].mxu0 %v612
    %v680 = vpop.f32.mrb[0].mxu0
    %v681 = vadd.f32 %v191, %v680
    %v682 = vpop.f32.mrb[0].mxu0
    %683 = vdwg.mxu0
    %v684 = vmul.f32 %v681, 0.5
    %v685 = vmul.f32 %v681, 0.044715
    %v686 = vmul.f32 %v685, %v681
    %v687 = vmul.f32 %v686, %v681
    %v688 = vadd.f32 %v681, %v687
    %v689 = vmul.f32 %v688, 0.7978846
    %v690 = vtanh.pop %v689
    %v691 = vadd.f32 %v690, 1.0
    %v692 = vmul.f32 %v684, %v691
    %694 = vrot.lane.b32.xlu0 %v692, 32
    %v695 = vpop.permute.xlu0 %694
    %v697 = vsel %vm279, %v597, %v695
    %s698 = scalar_lea.vmem [#allocation5], 16
    %699 = vst [vmem:[%s698] sm:$0xff] %v697
    %s700 = scalar_lea.vmem %s2, 24
    %v701 = vld [vmem:[%s700] sm:$0xff]
    %703 = vrot.lane.b32.xlu0 %v701, 4
    %v704 = vpop.permute.xlu0 %703
    %707 = vrot.lane.b32.xlu0 %v597, 12
    %v708 = vpop.permute.xlu0 %707
    %v710 = vsel %vm63, %v39, %v704
    %v711 = vsel %vm65, %v710, %v708
    %v712 = vsel %vm67, %v711, 0.0
    %713 = vadd.xlane.f32.xlu0 %v712
    %v714 = vpop.xlane.xlu0 %713
    %v715 = vmul.f32 %v714, 0.022727273
    %v716 = vsub.f32 %v711, %v715
    %v717 = vmul.f32 %v716, %v716
    %v718 = vsel %vm67, %v717, 0.0
    %719 = vadd.xlane.f32.xlu0 %v718
    %v720 = vpop.xlane.xlu0 %719
    %v721 = vmul.f32 %v720, 0.022727273
    %v722 = vadd.f32 %v721, 1e-05
    %v723 = vrsqrt.pop %v722
    %v724 = vmul.f32 %v716, %v723
    %v726 = vsel %vm67, %v724, 0
    %728 = vmatprep.subr.mxu0 0.0
    %729 = vmatpush1.msra.mxu0 %v40
    %730 = vmatprep.subr.mxu0 0.0
    %731 = vmatpush1.msra.mxu0 %v41
    %732 = vmatprep.subr.mxu0 0.0
    %733 = vmatpush1.msra.mxu0 %v42
    %734 = vmatprep.subr.mxu0 0.0
    %735 = vmatpush1.msra.mxu0 %v43
    %736 = vmatprep.subr.mxu0 0.0
    %737 = vmatpush1.msra.mxu0 %v44
    %738 = vmatprep.subr.mxu0 0.0
    %739 = vmatpush1.msra.mxu0 %v92
    %740 = vmatprep.subr.mxu0 0.0
    %741 = vmatpush1.msra.mxu0 0.0
    %742 = vmatprep.subr.mxu0 0.0
    %743 = vmatpush1.msra.mxu0 0.0
    %744 = vmatprep.subr.mxu0 0.0
    %745 = vmatpush1.msra.mxu0 0.0
    %746 = vmatprep.subr.mxu0 0.0
    %747 = vmatpush1.msra.mxu0 0.0
    %748 = vmatprep.subr.mxu0 0.0
    %749 = vmatpush1.msra.mxu0 0.0
    %750 = vmatprep.subr.mxu0 0.0
    %751 = vmatpush1.msra.mxu0 0.0
    %752 = vmatprep.subr.mxu0 0.0
    %753 = vmatpush1.msra.mxu0 0.0
    %754 = vmatprep.subr.mxu0 0.0
    %755 = vmatpush1.msra.mxu0 0.0
    %756 = vmatprep.subr.mxu0 0.0
    %757 = vmatpush1.msra.mxu0 0.0
    %758 = vmatprep.subr.mxu0 0.0
    %759 = vmatpush1.msra.mxu0 0.0
    %760 = vmatprep.subr.mxu0 0.0
    %761 = vmatpush1.msra.mxu0 0.0
    %762 = vmatprep.subr.mxu0 0.0
    %763 = vmatpush1.msra.mxu0 0.0
    %764 = vmatprep.subr.mxu0 0.0
    %765 = vmatpush1.msra.mxu0 0.0
    %766 = vmatprep.subr.mxu0 0.0
    %767 = vmatpush1.msra.mxu0 0.0
    %768 = vmatprep.subr.mxu0 0.0
    %769 = vmatpush1.msra.mxu0 0.0
    %770 = vmatprep.subr.mxu0 0.0
    %771 = vmatpush1.msra.mxu0 0.0
    %772 = vmatprep.subr.mxu0 0.0
    %773 = vmatpush1.msra.mxu0 0.0
    %774 = vmatprep.subr.mxu0 0.0
    %775 = vmatpush1.msra.mxu0 0.0
    %776 = vmatprep.subr.mxu0 0.0
    %777 = vmatpush1.msra.mxu0 0.0
    %778 = vmatprep.subr.mxu0 0.0
    %779 = vmatpush1.msra.mxu0 0.0
    %780 = vmatprep.subr.mxu0 0.0
    %781 = vmatpush1.msra.mxu0 0.0
    %782 = vmatprep.subr.mxu0 0.0
    %783 = vmatpush1.msra.mxu0 0.0
    %784 = vmatprep.subr.mxu0 0.0
    %785 = vmatpush1.msra.mxu0 0.0
    %786 = vmatprep.subr.mxu0 0.0
    %787 = vmatpush1.msra.mxu0 0.0
    %788 = vmatprep.subr.mxu0 0.0
    %789 = vmatpush1.msra.mxu0 0.0
    %790 = vmatprep.subr.mxu0 0.0
    %791 = vmatpush1.msra.mxu0 0.0
    %792 = vmatprep.mubr.f32.mxu0 0.0
    %793 = vmatmul.mubr.f32.gmra.mrb[0].mxu0 %v726
    %v794 = vpop.f32.mrb[0].mxu0
    %v795 = vadd.f32 %v85, %v794
    %v796 = vpop.f32.mrb[0].mxu0
    %797 = vdwg.mxu0
    %v798 = vmul.f32 %v795, 0.5
    %v799 = vmul.f32 %v795, 0.044715
    %v800 = vmul.f32 %v799, %v795
    %v801 = vmul.f32 %v800, %v795
    %v802 = vadd.f32 %v795, %v801
    %v803 = vmul.f32 %v802, 0.7978846
    %v804 = vtanh.pop %v803
    %v805 = vadd.f32 %v804, 1.0
    %v806 = vmul.f32 %v798, %v805
    %v807 = vsel %vm173, %v806, 0.0
    %808 = vadd.xlane.f32.xlu0 %v807
    %v809 = vpop.xlane.xlu0 %808
    %v810 = vmul.f32 %v809, 0.025
    %v811 = vsub.f32 %v806, %v810
    %v812 = vmul.f32 %v811, %v811
    %v813 = vsel %vm173, %v812, 0.0
    %814 = vadd.xlane.f32.xlu0 %v813
    %v815 = vpop.xlane.xlu0 %814
    %v816 = vmul.f32 %v815, 0.025
    %v817 = vadd.f32 %v816, 1e-05
    %v818 = vrsqrt.pop %v817
    %v819 = vmul.f32 %v811, %v818
    %v821 = vsel %vm173, %v819, 0
    %823 = vmatprep.subr.mxu0 0.0
    %824 = vmatpush1.msra.mxu0 %v47
    %825 = vmatprep.subr.mxu0 0.0
    %826 = vmatpush1.msra.mxu0 %v48
    %827 = vmatprep.subr.mxu0 0.0
    %828 = vmatpush1.msra.mxu0 %v49
    %829 = vmatprep.subr.mxu0 0.0
    %830 = vmatpush1.msra.mxu0 %v50
    %831 = vmatprep.subr.mxu0 0.0
    %832 = vmatpush1.msra.mxu0 %v51
    %833 = vmatprep.subr.mxu0 0.0
    %834 = vmatpush1.msra.mxu0 0.0
    %835 = vmatprep.subr.mxu0 0.0
    %836 = vmatpush1.msra.mxu0 0.0
    %837 = vmatprep.subr.mxu0 0.0
    %838 = vmatpush1.msra.mxu0 0.0
    %839 = vmatprep.subr.mxu0 0.0
    %840 = vmatpush1.msra.mxu0 0.0
    %841 = vmatprep.subr.mxu0 0.0
    %842 = vmatpush1.msra.mxu0 0.0
    %843 = vmatprep.subr.mxu0 0.0
    %844 = vmatpush1.msra.mxu0 0.0
    %845 = vmatprep.subr.mxu0 0.0
    %846 = vmatpush1.msra.mxu0 0.0
    %847 = vmatprep.subr.mxu0 0.0
    %848 = vmatpush1.msra.mxu0 0.0
    %849 = vmatprep.subr.mxu0 0.0
    %850 = vmatpush1.msra.mxu0 0.0
    %851 = vmatprep.subr.mxu0 0.0
    %852 = vmatpush1.msra.mxu0 0.0
    %853 = vmatprep.subr.mxu0 0.0
    %854 = vmatpush1.msra.mxu0 0.0
    %855 = vmatprep.subr.mxu0 0.0
    %856 = vmatpush1.msra.mxu0 0.0
    %857 = vmatprep.subr.mxu0 0.0
    %858 = vmatpush1.msra.mxu0 0.0
    %859 = vmatprep.subr.mxu0 0.0
    %860 = vmatpush1.msra.mxu0 0.0
    %861 = vmatprep.subr.mxu0 0.0
    %862 = vmatpush1.msra.mxu0 0.0
    %863 = vmatprep.subr.mxu0 0.0
    %864 = vmatpush1.msra.mxu0 0.0
    %865 = vmatprep.subr.mxu0 0.0
    %866 = vmatpush1.msra.mxu0 0.0
    %867 = vmatprep.subr.mxu0 0.0
    %868 = vmatpush1.msra.mxu0 0.0
    %869 = vmatprep.subr.mxu0 0.0
    %870 = vmatpush1.msra.mxu0 0.0
    %871 = vmatprep.subr.mxu0 0.0
    %872 = vmatpush1.msra.mxu0 0.0
    %873 = vmatprep.subr.mxu0 0.0
    %874 = vmatpush1.msra.mxu0 0.0
    %875 = vmatprep.subr.mxu0 0.0
    %876 = vmatpush1.msra.mxu0 0.0
    %877 = vmatprep.subr.mxu0 0.0
    %878 = vmatpush1.msra.mxu0 0.0
    %879 = vmatprep.subr.mxu0 0.0
    %880 = vmatpush1.msra.mxu0 0.0
    %881 = vmatprep.subr.mxu0 0.0
    %882 = vmatpush1.msra.mxu0 0.0
    %883 = vmatprep.subr.mxu0 0.0
    %884 = vmatpush1.msra.mxu0 0.0
    %885 = vmatprep.subr.mxu0 0.0
    %886 = vmatpush1.msra.mxu0 0.0
    %887 = vmatprep.mubr.f32.mxu0 0.0
    %888 = vmatmul.mubr.f32.gmra.mrb[0].mxu0 %v821
    %v889 = vpop.f32.mrb[0].mxu0
    %v890 = vadd.f32 %v191, %v889
    %v891 = vpop.f32.mrb[0].mxu0
    %892 = vdwg.mxu0
    %v893 = vmul.f32 %v890, 0.5
    %v894 = vmul.f32 %v890, 0.044715
    %v895 = vmul.f32 %v894, %v890
    %v896 = vmul.f32 %v895, %v890
    %v897 = vadd.f32 %v890, %v896
    %v898 = vmul.f32 %v897, 0.7978846
    %v899 = vtanh.pop %v898
    %v900 = vadd.f32 %v899, 1.0
    %v901 = vmul.f32 %v893, %v900
    %903 = vrot.lane.b32.xlu0 %v901, 32
    %v904 = vpop.permute.xlu0 %903
    %v906 = vsel %vm279, %v806, %v904
    %s907 = scalar_lea.vmem [#allocation5], 24
    %908 = vst [vmem:[%s907] sm:$0xff] %v906
    %s909 = scalar_lea.vmem %s2, 32
    %v910 = vld [vmem:[%s909] sm:$0xff]
    %912 = vrot.lane.b32.xlu0 %v910, 4
    %v913 = vpop.permute.xlu0 %912
    %916 = vrot.lane.b32.xlu0 %v806, 12
    %v917 = vpop.permute.xlu0 %916
    %v919 = vsel %vm63, %v39, %v913
    %v920 = vsel %vm65, %v919, %v917
    %v921 = vsel %vm67, %v920, 0.0
    %922 = vadd.xlane.f32.xlu0 %v921
    %v923 = vpop.xlane.xlu0 %922
    %v924 = vmul.f32 %v923, 0.022727273
    %v925 = vsub.f32 %v920, %v924
    %v926 = vmul.f32 %v925, %v925
    %v927 = vsel %vm67, %v926, 0.0
    %928 = vadd.xlane.f32.xlu0 %v927
    %v929 = vpop.xlane.xlu0 %928
    %v930 = vmul.f32 %v929, 0.022727273
    %v931 = vadd.f32 %v930, 1e-05
    %v932 = vrsqrt.pop %v931
    %v933 = vmul.f32 %v925, %v932
    %v935 = vsel %vm67, %v933, 0
    %937 = vmatprep.subr.mxu0 0.0
    %938 = vmatpush1.msra.mxu0 %v40
    %939 = vmatprep.subr.mxu0 0.0
    %940 = vmatpush1.msra.mxu0 %v41
    %941 = vmatprep.subr.mxu0 0.0
    %942 = vmatpush1.msra.mxu0 %v42
    %943 = vmatprep.subr.mxu0 0.0
    %944 = vmatpush1.msra.mxu0 %v43
    %945 = vmatprep.subr.mxu0 0.0
    %946 = vmatpush1.msra.mxu0 %v44
    %947 = vmatprep.subr.mxu0 0.0
    %948 = vmatpush1.msra.mxu0 %v92
    %949 = vmatprep.subr.mxu0 0.0
    %950 = vmatpush1.msra.mxu0 0.0
    %951 = vmatprep.subr.mxu0 0.0
    %952 = vmatpush1.msra.mxu0 0.0
    %953 = vmatprep.subr.mxu0 0.0
    %954 = vmatpush1.msra.mxu0 0.0
    %955 = vmatprep.subr.mxu0 0.0
    %956 = vmatpush1.msra.mxu0 0.0
    %957 = vmatprep.subr.mxu0 0.0
    %958 = vmatpush1.msra.mxu0 0.0
    %959 = vmatprep.subr.mxu0 0.0
    %960 = vmatpush1.msra.mxu0 0.0
    %961 = vmatprep.subr.mxu0 0.0
    %962 = vmatpush1.msra.mxu0 0.0
    %963 = vmatprep.subr.mxu0 0.0
    %964 = vmatpush1.msra.mxu0 0.0
    %965 = vmatprep.subr.mxu0 0.0
    %966 = vmatpush1.msra.mxu0 0.0
    %967 = vmatprep.subr.mxu0 0.0
    %968 = vmatpush1.msra.mxu0 0.0
    %969 = vmatprep.subr.mxu0 0.0
    %970 = vmatpush1.msra.mxu0 0.0
    %971 = vmatprep.subr.mxu0 0.0
    %972 = vmatpush1.msra.mxu0 0.0
    %973 = vmatprep.subr.mxu0 0.0
    %974 = vmatpush1.msra.mxu0 0.0
    %975 = vmatprep.subr.mxu0 0.0
    %976 = vmatpush1.msra.mxu0 0.0
    %977 = vmatprep.subr.mxu0 0.0
    %978 = vmatpush1.msra.mxu0 0.0
    %979 = vmatprep.subr.mxu0 0.0
    %980 = vmatpush1.msra.mxu0 0.0
    %981 = vmatprep.subr.mxu0 0.0
    %982 = vmatpush1.msra.mxu0 0.0
    %983 = vmatprep.subr.mxu0 0.0
    %984 = vmatpush1.msra.mxu0 0.0
    %985 = vmatprep.subr.mxu0 0.0
    %986 = vmatpush1.msra.mxu0 0.0
    %987 = vmatprep.subr.mxu0 0.0
    %988 = vmatpush1.msra.mxu0 0.0
    %989 = vmatprep.subr.mxu0 0.0
    %990 = vmatpush1.msra.mxu0 0.0
    %991 = vmatprep.subr.mxu0 0.0
    %992 = vmatpush1.msra.mxu0 0.0
    %993 = vmatprep.subr.mxu0 0.0
    %994 = vmatpush1.msra.mxu0 0.0
    %995 = vmatprep.subr.mxu0 0.0
    %996 = vmatpush1.msra.mxu0 0.0
    %997 = vmatprep.subr.mxu0 0.0
    %998 = vmatpush1.msra.mxu0 0.0
    %999 = vmatprep.subr.mxu0 0.0
    %1000 = vmatpush1.msra.mxu0 0.0
    %1001 = vmatprep.mubr.f32.mxu0 0.0
    %1002 = vmatmul.mubr.f32.gmra.mrb[0].mxu0 %v935
    %v1003 = vpop.f32.mrb[0].mxu0
    %v1004 = vadd.f32 %v85, %v1003
    %v1005 = vpop.f32.mrb[0].mxu0
    %1006 = vdwg.mxu0
    %v1007 = vmul.f32 %v1004, 0.5
    %v1008 = vmul.f32 %v1004, 0.044715
    %v1009 = vmul.f32 %v1008, %v1004
    %v1010 = vmul.f32 %v1009, %v1004
    %v1011 = vadd.f32 %v1004, %v1010
    %v1012 = vmul.f32 %v1011, 0.7978846
    %v1013 = vtanh.pop %v1012
    %v1014 = vadd.f32 %v1013, 1.0
    %v1015 = vmul.f32 %v1007, %v1014
    %v1016 = vsel %vm173, %v1015, 0.0
    %1017 = vadd.xlane.f32.xlu0 %v1016
    %v1018 = vpop.xlane.xlu0 %1017
    %v1019 = vmul.f32 %v1018, 0.025
    %v1020 = vsub.f32 %v1015, %v1019
    %v1021 = vmul.f32 %v1020, %v1020
    %v1022 = vsel %vm173, %v1021, 0.0
    %1023 = vadd.xlane.f32.xlu0 %v1022
    %v1024 = vpop.xlane.xlu0 %1023
    %v1025 = vmul.f32 %v1024, 0.025
    %v1026 = vadd.f32 %v1025, 1e-05
    %v1027 = vrsqrt.pop %v1026
    %v1028 = vmul.f32 %v1020, %v1027
    %v1030 = vsel %vm173, %v1028, 0
    %1032 = vmatprep.subr.mxu0 0.0
    %1033 = vmatpush1.msra.mxu0 %v47
    %1034 = vmatprep.subr.mxu0 0.0
    %1035 = vmatpush1.msra.mxu0 %v48
    %1036 = vmatprep.subr.mxu0 0.0
    %1037 = vmatpush1.msra.mxu0 %v49
    %1038 = vmatprep.subr.mxu0 0.0
    %1039 = vmatpush1.msra.mxu0 %v50
    %1040 = vmatprep.subr.mxu0 0.0
    %1041 = vmatpush1.msra.mxu0 %v51
    %1042 = vmatprep.subr.mxu0 0.0
    %1043 = vmatpush1.msra.mxu0 0.0
    %1044 = vmatprep.subr.mxu0 0.0
    %1045 = vmatpush1.msra.mxu0 0.0
    %1046 = vmatprep.subr.mxu0 0.0
    %1047 = vmatpush1.msra.mxu0 0.0
    %1048 = vmatprep.subr.mxu0 0.0
    %1049 = vmatpush1.msra.mxu0 0.0
    %1050 = vmatprep.subr.mxu0 0.0
    %1051 = vmatpush1.msra.mxu0 0.0
    %1052 = vmatprep.subr.mxu0 0.0
    %1053 = vmatpush1.msra.mxu0 0.0
    %1054 = vmatprep.subr.mxu0 0.0
    %1055 = vmatpush1.msra.mxu0 0.0
    %1056 = vmatprep.subr.mxu0 0.0
    %1057 = vmatpush1.msra.mxu0 0.0
    %1058 = vmatprep.subr.mxu0 0.0
    %1059 = vmatpush1.msra.mxu0 0.0
    %1060 = vmatprep.subr.mxu0 0.0
    %1061 = vmatpush1.msra.mxu0 0.0
    %1062 = vmatprep.subr.mxu0 0.0
    %1063 = vmatpush1.msra.mxu0 0.0
    %1064 = vmatprep.subr.mxu0 0.0
    %1065 = vmatpush1.msra.mxu0 0.0
    %1066 = vmatprep.subr.mxu0 0.0
    %1067 = vmatpush1.msra.mxu0 0.0
    %1068 = vmatprep.subr.mxu0 0.0
    %1069 = vmatpush1.msra.mxu0 0.0
    %1070 = vmatprep.subr.mxu0 0.0
    %1071 = vmatpush1.msra.mxu0 0.0
    %1072 = vmatprep.subr.mxu0 0.0
    %1073 = vmatpush1.msra.mxu0 0.0
    %1074 = vmatprep.subr.mxu0 0.0
    %1075 = vmatpush1.msra.mxu0 0.0
    %1076 = vmatprep.subr.mxu0 0.0
    %1077 = vmatpush1.msra.mxu0 0.0
    %1078 = vmatprep.subr.mxu0 0.0
    %1079 = vmatpush1.msra.mxu0 0.0
    %1080 = vmatprep.subr.mxu0 0.0
    %1081 = vmatpush1.msra.mxu0 0.0
    %1082 = vmatprep.subr.mxu0 0.0
    %1083 = vmatpush1.msra.mxu0 0.0
    %1084 = vmatprep.subr.mxu0 0.0
    %1085 = vmatpush1.msra.mxu0 0.0
    %1086 = vmatprep.subr.mxu0 0.0
    %1087 = vmatpush1.msra.mxu0 0.0
    %1088 = vmatprep.subr.mxu0 0.0
    %1089 = vmatpush1.msra.mxu0 0.0
    %1090 = vmatprep.subr.mxu0 0.0
    %1091 = vmatpush1.msra.mxu0 0.0
    %1092 = vmatprep.subr.mxu0 0.0
    %1093 = vmatpush1.msra.mxu0 0.0
    %1094 = vmatprep.subr.mxu0 0.0
    %1095 = vmatpush1.msra.mxu0 0.0
    %1096 = vmatprep.mubr.f32.mxu0 0.0
    %1097 = vmatmul.mubr.f32.gmra.mrb[0].mxu0 %v1030
    %v1098 = vpop.f32.mrb[0].mxu0
    %v1099 = vadd.f32 %v191, %v1098
    %v1100 = vpop.f32.mrb[0].mxu0
    %1101 = vdwg.mxu0
    %v1102 = vmul.f32 %v1099, 0.5
    %v1103 = vmul.f32 %v1099, 0.044715
    %v1104 = vmul.f32 %v1103, %v1099
    %v1105 = vmul.f32 %v1104, %v1099
    %v1106 = vadd.f32 %v1099, %v1105
    %v1107 = vmul.f32 %v1106, 0.7978846
    %v1108 = vtanh.pop %v1107
    %v1109 = vadd.f32 %v1108, 1.0
    %v1110 = vmul.f32 %v1102, %v1109
    %1112 = vrot.lane.b32.xlu0 %v1110, 32
    %v1113 = vpop.permute.xlu0 %1112
    %v1115 = vsel %vm279, %v1015, %v1113
    %s1116 = scalar_lea.vmem [#allocation5], 32
    %1117 = vst [vmem:[%s1116] sm:$0xff] %v1115
    %s1118 = scalar_lea.vmem %s2, 40
    %v1119 = vld [vmem:[%s1118] sm:$0xff]
    %1121 = vrot.lane.b32.xlu0 %v1119, 4
    %v1122 = vpop.permute.xlu0 %1121
    %1125 = vrot.lane.b32.xlu0 %v1015, 12
    %v1126 = vpop.permute.xlu0 %1125
    %v1128 = vsel %vm63, %v39, %v1122
    %v1129 = vsel %vm65, %v1128, %v1126
    %v1130 = vsel %vm67, %v1129, 0.0
    %1131 = vadd.xlane.f32.xlu0 %v1130
    %v1132 = vpop.xlane.xlu0 %1131
    %v1133 = vmul.f32 %v1132, 0.022727273
    %v1134 = vsub.f32 %v1129, %v1133
    %v1135 = vmul.f32 %v1134, %v1134
    %v1136 = vsel %vm67, %v1135, 0.0
    %1137 = vadd.xlane.f32.xlu0 %v1136
    %v1138 = vpop.xlane.xlu0 %1137
    %v1139 = vmul.f32 %v1138, 0.022727273
    %v1140 = vadd.f32 %v1139, 1e-05
    %v1141 = vrsqrt.pop %v1140
    %v1142 = vmul.f32 %v1134, %v1141
    %v1144 = vsel %vm67, %v1142, 0
    %1146 = vmatprep.subr.mxu0 0.0
    %1147 = vmatpush1.msra.mxu0 %v40
    %1148 = vmatprep.subr.mxu0 0.0
    %1149 = vmatpush1.msra.mxu0 %v41
    %1150 = vmatprep.subr.mxu0 0.0
    %1151 = vmatpush1.msra.mxu0 %v42
    %1152 = vmatprep.subr.mxu0 0.0
    %1153 = vmatpush1.msra.mxu0 %v43
    %1154 = vmatprep.subr.mxu0 0.0
    %1155 = vmatpush1.msra.mxu0 %v44
    %1156 = vmatprep.subr.mxu0 0.0
    %1157 = vmatpush1.msra.mxu0 %v92
    %1158 = vmatprep.subr.mxu0 0.0
    %1159 = vmatpush1.msra.mxu0 0.0
    %1160 = vmatprep.subr.mxu0 0.0
    %1161 = vmatpush1.msra.mxu0 0.0
    %1162 = vmatprep.subr.mxu0 0.0
    %1163 = vmatpush1.msra.mxu0 0.0
    %1164 = vmatprep.subr.mxu0 0.0
    %1165 = vmatpush1.msra.mxu0 0.0
    %1166 = vmatprep.subr.mxu0 0.0
    %1167 = vmatpush1.msra.mxu0 0.0
    %1168 = vmatprep.subr.mxu0 0.0
    %1169 = vmatpush1.msra.mxu0 0.0
    %1170 = vmatprep.subr.mxu0 0.0
    %1171 = vmatpush1.msra.mxu0 0.0
    %1172 = vmatprep.subr.mxu0 0.0
    %1173 = vmatpush1.msra.mxu0 0.0
    %1174 = vmatprep.subr.mxu0 0.0
    %1175 = vmatpush1.msra.mxu0 0.0
    %1176 = vmatprep.subr.mxu0 0.0
    %1177 = vmatpush1.msra.mxu0 0.0
    %1178 = vmatprep.subr.mxu0 0.0
    %1179 = vmatpush1.msra.mxu0 0.0
    %1180 = vmatprep.subr.mxu0 0.0
    %1181 = vmatpush1.msra.mxu0 0.0
    %1182 = vmatprep.subr.mxu0 0.0
    %1183 = vmatpush1.msra.mxu0 0.0
    %1184 = vmatprep.subr.mxu0 0.0
    %1185 = vmatpush1.msra.mxu0 0.0
    %1186 = vmatprep.subr.mxu0 0.0
    %1187 = vmatpush1.msra.mxu0 0.0
    %1188 = vmatprep.subr.mxu0 0.0
    %1189 = vmatpush1.msra.mxu0 0.0
    %1190 = vmatprep.subr.mxu0 0.0
    %1191 = vmatpush1.msra.mxu0 0.0
    %1192 = vmatprep.subr.mxu0 0.0
    %1193 = vmatpush1.msra.mxu0 0.0
    %1194 = vmatprep.subr.mxu0 0.0
    %1195 = vmatpush1.msra.mxu0 0.0
    %1196 = vmatprep.subr.mxu0 0.0
    %1197 = vmatpush1.msra.mxu0 0.0
    %1198 = vmatprep.subr.mxu0 0.0
    %1199 = vmatpush1.msra.mxu0 0.0
    %1200 = vmatprep.subr.mxu0 0.0
    %1201 = vmatpush1.msra.mxu0 0.0
    %1202 = vmatprep.subr.mxu0 0.0
    %1203 = vmatpush1.msra.mxu0 0.0
    %1204 = vmatprep.subr.mxu0 0.0
    %1205 = vmatpush1.msra.mxu0 0.0
    %1206 = vmatprep.subr.mxu0 0.0
    %1207 = vmatpush1.msra.mxu0 0.0
    %1208 = vmatprep.subr.mxu0 0.0
    %1209 = vmatpush1.msra.mxu0 0.0
    %1210 = vmatprep.mubr.f32.mxu0 0.0
    %1211 = vmatmul.mubr.f32.gmra.mrb[0].mxu0 %v1144
    %v1212 = vpop.f32.mrb[0].mxu0
    %v1213 = vadd.f32 %v85, %v1212
    %v1214 = vpop.f32.mrb[0].mxu0
    %1215 = vdwg.mxu0
    %v1216 = vmul.f32 %v1213, 0.5
    %v1217 = vmul.f32 %v1213, 0.044715
    %v1218 = vmul.f32 %v1217, %v1213
    %v1219 = vmul.f32 %v1218, %v1213
    %v1220 = vadd.f32 %v1213, %v1219
    %v1221 = vmul.f32 %v1220, 0.7978846
    %v1222 = vtanh.pop %v1221
    %v1223 = vadd.f32 %v1222, 1.0
    %v1224 = vmul.f32 %v1216, %v1223
    %v1225 = vsel %vm173, %v1224, 0.0
    %1226 = vadd.xlane.f32.xlu0 %v1225
    %v1227 = vpop.xlane.xlu0 %1226
    %v1228 = vmul.f32 %v1227, 0.025
    %v1229 = vsub.f32 %v1224, %v1228
    %v1230 = vmul.f32 %v1229, %v1229
    %v1231 = vsel %vm173, %v1230, 0.0
    %1232 = vadd.xlane.f32.xlu0 %v1231
    %v1233 = vpop.xlane.xlu0 %1232
    %v1234 = vmul.f32 %v1233, 0.025
    %v1235 = vadd.f32 %v1234, 1e-05
    %v1236 = vrsqrt.pop %v1235
    %v1237 = vmul.f32 %v1229, %v1236
    %v1239 = vsel %vm173, %v1237, 0
    %1241 = vmatprep.subr.mxu0 0.0
    %1242 = vmatpush1.msra.mxu0 %v47
    %1243 = vmatprep.subr.mxu0 0.0
    %1244 = vmatpush1.msra.mxu0 %v48
    %1245 = vmatprep.subr.mxu0 0.0
    %1246 = vmatpush1.msra.mxu0 %v49
    %1247 = vmatprep.subr.mxu0 0.0
    %1248 = vmatpush1.msra.mxu0 %v50
    %1249 = vmatprep.subr.mxu0 0.0
    %1250 = vmatpush1.msra.mxu0 %v51
    %1251 = vmatprep.subr.mxu0 0.0
    %1252 = vmatpush1.msra.mxu0 0.0
    %1253 = vmatprep.subr.mxu0 0.0
    %1254 = vmatpush1.msra.mxu0 0.0
    %1255 = vmatprep.subr.mxu0 0.0
    %1256 = vmatpush1.msra.mxu0 0.0
    %1257 = vmatprep.subr.mxu0 0.0
    %1258 = vmatpush1.msra.mxu0 0.0
    %1259 = vmatprep.subr.mxu0 0.0
    %1260 = vmatpush1.msra.mxu0 0.0
    %1261 = vmatprep.subr.mxu0 0.0
    %1262 = vmatpush1.msra.mxu0 0.0
    %1263 = vmatprep.subr.mxu0 0.0
    %1264 = vmatpush1.msra.mxu0 0.0
    %1265 = vmatprep.subr.mxu0 0.0
    %1266 = vmatpush1.msra.mxu0 0.0
    %1267 = vmatprep.subr.mxu0 0.0
    %1268 = vmatpush1.msra.mxu0 0.0
    %1269 = vmatprep.subr.mxu0 0.0
    %1270 = vmatpush1.msra.mxu0 0.0
    %1271 = vmatprep.subr.mxu0 0.0
    %1272 = vmatpush1.msra.mxu0 0.0
    %1273 = vmatprep.subr.mxu0 0.0
    %1274 = vmatpush1.msra.mxu0 0.0
    %1275 = vmatprep.subr.mxu0 0.0
    %1276 = vmatpush1.msra.mxu0 0.0
    %1277 = vmatprep.subr.mxu0 0.0
    %1278 = vmatpush1.msra.mxu0 0.0
    %1279 = vmatprep.subr.mxu0 0.0
    %1280 = vmatpush1.msra.mxu0 0.0
    %1281 = vmatprep.subr.mxu0 0.0
    %1282 = vmatpush1.msra.mxu0 0.0
    %1283 = vmatprep.subr.mxu0 0.0
    %1284 = vmatpush1.msra.mxu0 0.0
    %1285 = vmatprep.subr.mxu0 0.0
    %1286 = vmatpush1.msra.mxu0 0.0
    %1287 = vmatprep.subr.mxu0 0.0
    %1288 = vmatpush1.msra.mxu0 0.0
    %1289 = vmatprep.subr.mxu0 0.0
    %1290 = vmatpush1.msra.mxu0 0.0
    %1291 = vmatprep.subr.mxu0 0.0
    %1292 = vmatpush1.msra.mxu0 0.0
    %1293 = vmatprep.subr.mxu0 0.0
    %1294 = vmatpush1.msra.mxu0 0.0
    %1295 = vmatprep.subr.mxu0 0.0
    %1296 = vmatpush1.msra.mxu0 0.0
    %1297 = vmatprep.subr.mxu0 0.0
    %1298 = vmatpush1.msra.mxu0 0.0
    %1299 = vmatprep.subr.mxu0 0.0
    %1300 = vmatpush1.msra.mxu0 0.0
    %1301 = vmatprep.subr.mxu0 0.0
    %1302 = vmatpush1.msra.mxu0 0.0
    %1303 = vmatprep.subr.mxu0 0.0
    %1304 = vmatpush1.msra.mxu0 0.0
    %1305 = vmatprep.mubr.f32.mxu0 0.0
    %1306 = vmatmul.mubr.f32.gmra.mrb[0].mxu0 %v1239
    %v1307 = vpop.f32.mrb[0].mxu0
    %v1308 = vadd.f32 %v191, %v1307
    %v1309 = vpop.f32.mrb[0].mxu0
    %1310 = vdwg.mxu0
    %v1311 = vmul.f32 %v1308, 0.5
    %v1312 = vmul.f32 %v1308, 0.044715
    %v1313 = vmul.f32 %v1312, %v1308
    %v1314 = vmul.f32 %v1313, %v1308
    %v1315 = vadd.f32 %v1308, %v1314
    %v1316 = vmul.f32 %v1315, 0.7978846
    %v1317 = vtanh.pop %v1316
    %v1318 = vadd.f32 %v1317, 1.0
    %v1319 = vmul.f32 %v1311, %v1318
    %1321 = vrot.lane.b32.xlu0 %v1319, 32
    %v1322 = vpop.permute.xlu0 %1321
    %v1324 = vsel %vm279, %v1224, %v1322
    %s1325 = scalar_lea.vmem [#allocation5], 40
    %1326 = vst [vmem:[%s1325] sm:$0xff] %v1324
    %s1327 = scalar_lea.vmem %s2, 48
    %v1328 = vld [vmem:[%s1327] sm:$0xff]
    %1330 = vrot.lane.b32.xlu0 %v1328, 4
    %v1331 = vpop.permute.xlu0 %1330
    %1334 = vrot.lane.b32.xlu0 %v1224, 12
    %v1335 = vpop.permute.xlu0 %1334
    %v1337 = vsel %vm63, %v39, %v1331
    %v1338 = vsel %vm65, %v1337, %v1335
    %v1339 = vsel %vm67, %v1338, 0.0
    %1340 = vadd.xlane.f32.xlu0 %v1339
    %v1341 = vpop.xlane.xlu0 %1340
    %v1342 = vmul.f32 %v1341, 0.022727273
    %v1343 = vsub.f32 %v1338, %v1342
    %v1344 = vmul.f32 %v1343, %v1343
    %v1345 = vsel %vm67, %v1344, 0.0
    %1346 = vadd.xlane.f32.xlu0 %v1345
    %v1347 = vpop.xlane.xlu0 %1346
    %v1348 = vmul.f32 %v1347, 0.022727273
    %v1349 = vadd.f32 %v1348, 1e-05
    %v1350 = vrsqrt.pop %v1349
    %v1351 = vmul.f32 %v1343, %v1350
    %v1353 = vsel %vm67, %v1351, 0
    %1355 = vmatprep.subr.mxu0 0.0
    %1356 = vmatpush1.msra.mxu0 %v40
    %1357 = vmatprep.subr.mxu0 0.0
    %1358 = vmatpush1.msra.mxu0 %v41
    %1359 = vmatprep.subr.mxu0 0.0
    %1360 = vmatpush1.msra.mxu0 %v42
    %1361 = vmatprep.subr.mxu0 0.0
    %1362 = vmatpush1.msra.mxu0 %v43
    %1363 = vmatprep.subr.mxu0 0.0
    %1364 = vmatpush1.msra.mxu0 %v44
    %1365 = vmatprep.subr.mxu0 0.0
    %1366 = vmatpush1.msra.mxu0 %v92
    %1367 = vmatprep.subr.mxu0 0.0
    %1368 = vmatpush1.msra.mxu0 0.0
    %1369 = vmatprep.subr.mxu0 0.0
    %1370 = vmatpush1.msra.mxu0 0.0
    %1371 = vmatprep.subr.mxu0 0.0
    %1372 = vmatpush1.msra.mxu0 0.0
    %1373 = vmatprep.subr.mxu0 0.0
    %1374 = vmatpush1.msra.mxu0 0.0
    %1375 = vmatprep.subr.mxu0 0.0
    %1376 = vmatpush1.msra.mxu0 0.0
    %1377 = vmatprep.subr.mxu0 0.0
    %1378 = vmatpush1.msra.mxu0 0.0
    %1379 = vmatprep.subr.mxu0 0.0
    %1380 = vmatpush1.msra.mxu0 0.0
    %1381 = vmatprep.subr.mxu0 0.0
    %1382 = vmatpush1.msra.mxu0 0.0
    %1383 = vmatprep.subr.mxu0 0.0
    %1384 = vmatpush1.msra.mxu0 0.0
    %1385 = vmatprep.subr.mxu0 0.0
    %1386 = vmatpush1.msra.mxu0 0.0
    %1387 = vmatprep.subr.mxu0 0.0
    %1388 = vmatpush1.msra.mxu0 0.0
    %1389 = vmatprep.subr.mxu0 0.0
    %1390 = vmatpush1.msra.mxu0 0.0
    %1391 = vmatprep.subr.mxu0 0.0
    %1392 = vmatpush1.msra.mxu0 0.0
    %1393 = vmatprep.subr.mxu0 0.0
    %1394 = vmatpush1.msra.mxu0 0.0
    %1395 = vmatprep.subr.mxu0 0.0
    %1396 = vmatpush1.msra.mxu0 0.0
    %1397 = vmatprep.subr.mxu0 0.0
    %1398 = vmatpush1.msra.mxu0 0.0
    %1399 = vmatprep.subr.mxu0 0.0
    %1400 = vmatpush1.msra.mxu0 0.0
    %1401 = vmatprep.subr.mxu0 0.0
    %1402 = vmatpush1.msra.mxu0 0.0
    %1403 = vmatprep.subr.mxu0 0.0
    %1404 = vmatpush1.msra.mxu0 0.0
    %1405 = vmatprep.subr.mxu0 0.0
    %1406 = vmatpush1.msra.mxu0 0.0
    %1407 = vmatprep.subr.mxu0 0.0
    %1408 = vmatpush1.msra.mxu0 0.0
    %1409 = vmatprep.subr.mxu0 0.0
    %1410 = vmatpush1.msra.mxu0 0.0
    %1411 = vmatprep.subr.mxu0 0.0
    %1412 = vmatpush1.msra.mxu0 0.0
    %1413 = vmatprep.subr.mxu0 0.0
    %1414 = vmatpush1.msra.mxu0 0.0
    %1415 = vmatprep.subr.mxu0 0.0
    %1416 = vmatpush1.msra.mxu0 0.0
    %1417 = vmatprep.subr.mxu0 0.0
    %1418 = vmatpush1.msra.mxu0 0.0
    %1419 = vmatprep.mubr.f32.mxu0 0.0
    %1420 = vmatmul.mubr.f32.gmra.mrb[0].mxu0 %v1353
    %v1421 = vpop.f32.mrb[0].mxu0
    %v1422 = vadd.f32 %v85, %v1421
    %v1423 = vpop.f32.mrb[0].mxu0
    %1424 = vdwg.mxu0
    %v1425 = vmul.f32 %v1422, 0.5
    %v1426 = vmul.f32 %v1422, 0.044715
    %v1427 = vmul.f32 %v1426, %v1422
    %v1428 = vmul.f32 %v1427, %v1422
    %v1429 = vadd.f32 %v1422, %v1428
    %v1430 = vmul.f32 %v1429, 0.7978846
    %v1431 = vtanh.pop %v1430
    %v1432 = vadd.f32 %v1431, 1.0
    %v1433 = vmul.f32 %v1425, %v1432
    %v1434 = vsel %vm173, %v1433, 0.0
    %1435 = vadd.xlane.f32.xlu0 %v1434
    %v1436 = vpop.xlane.xlu0 %1435
    %v1437 = vmul.f32 %v1436, 0.025
    %v1438 = vsub.f32 %v1433, %v1437
    %v1439 = vmul.f32 %v1438, %v1438
    %v1440 = vsel %vm173, %v1439, 0.0
    %1441 = vadd.xlane.f32.xlu0 %v1440
    %v1442 = vpop.xlane.xlu0 %1441
    %v1443 = vmul.f32 %v1442, 0.025
    %v1444 = vadd.f32 %v1443, 1e-05
    %v1445 = vrsqrt.pop %v1444
    %v1446 = vmul.f32 %v1438, %v1445
    %v1448 = vsel %vm173, %v1446, 0
    %1450 = vmatprep.subr.mxu0 0.0
    %1451 = vmatpush1.msra.mxu0 %v47
    %1452 = vmatprep.subr.mxu0 0.0
    %1453 = vmatpush1.msra.mxu0 %v48
    %1454 = vmatprep.subr.mxu0 0.0
    %1455 = vmatpush1.msra.mxu0 %v49
    %1456 = vmatprep.subr.mxu0 0.0
    %1457 = vmatpush1.msra.mxu0 %v50
    %1458 = vmatprep.subr.mxu0 0.0
    %1459 = vmatpush1.msra.mxu0 %v51
    %1460 = vmatprep.subr.mxu0 0.0
    %1461 = vmatpush1.msra.mxu0 0.0
    %1462 = vmatprep.subr.mxu0 0.0
    %1463 = vmatpush1.msra.mxu0 0.0
    %1464 = vmatprep.subr.mxu0 0.0
    %1465 = vmatpush1.msra.mxu0 0.0
    %1466 = vmatprep.subr.mxu0 0.0
    %1467 = vmatpush1.msra.mxu0 0.0
    %1468 = vmatprep.subr.mxu0 0.0
    %1469 = vmatpush1.msra.mxu0 0.0
    %1470 = vmatprep.subr.mxu0 0.0
    %1471 = vmatpush1.msra.mxu0 0.0
    %1472 = vmatprep.subr.mxu0 0.0
    %1473 = vmatpush1.msra.mxu0 0.0
    %1474 = vmatprep.subr.mxu0 0.0
    %1475 = vmatpush1.msra.mxu0 0.0
    %1476 = vmatprep.subr.mxu0 0.0
    %1477 = vmatpush1.msra.mxu0 0.0
    %1478 = vmatprep.subr.mxu0 0.0
    %1479 = vmatpush1.msra.mxu0 0.0
    %1480 = vmatprep.subr.mxu0 0.0
    %1481 = vmatpush1.msra.mxu0 0.0
    %1482 = vmatprep.subr.mxu0 0.0
    %1483 = vmatpush1.msra.mxu0 0.0
    %1484 = vmatprep.subr.mxu0 0.0
    %1485 = vmatpush1.msra.mxu0 0.0
    %1486 = vmatprep.subr.mxu0 0.0
    %1487 = vmatpush1.msra.mxu0 0.0
    %1488 = vmatprep.subr.mxu0 0.0
    %1489 = vmatpush1.msra.mxu0 0.0
    %1490 = vmatprep.subr.mxu0 0.0
    %1491 = vmatpush1.msra.mxu0 0.0
    %1492 = vmatprep.subr.mxu0 0.0
    %1493 = vmatpush1.msra.mxu0 0.0
    %1494 = vmatprep.subr.mxu0 0.0
    %1495 = vmatpush1.msra.mxu0 0.0
    %1496 = vmatprep.subr.mxu0 0.0
    %1497 = vmatpush1.msra.mxu0 0.0
    %1498 = vmatprep.subr.mxu0 0.0
    %1499 = vmatpush1.msra.mxu0 0.0
    %1500 = vmatprep.subr.mxu0 0.0
    %1501 = vmatpush1.msra.mxu0 0.0
    %1502 = vmatprep.subr.mxu0 0.0
    %1503 = vmatpush1.msra.mxu0 0.0
    %1504 = vmatprep.subr.mxu0 0.0
    %1505 = vmatpush1.msra.mxu0 0.0
    %1506 = vmatprep.subr.mxu0 0.0
    %1507 = vmatpush1.msra.mxu0 0.0
    %1508 = vmatprep.subr.mxu0 0.0
    %1509 = vmatpush1.msra.mxu0 0.0
    %1510 = vmatprep.subr.mxu0 0.0
    %1511 = vmatpush1.msra.mxu0 0.0
    %1512 = vmatprep.subr.mxu0 0.0
    %1513 = vmatpush1.msra.mxu0 0.0
    %1514 = vmatprep.mubr.f32.mxu0 0.0
    %1515 = vmatmul.mubr.f32.gmra.mrb[0].mxu0 %v1448
    %v1516 = vpop.f32.mrb[0].mxu0
    %v1517 = vadd.f32 %v191, %v1516
    %v1518 = vpop.f32.mrb[0].mxu0
    %1519 = vdwg.mxu0
    %v1520 = vmul.f32 %v1517, 0.5
    %v1521 = vmul.f32 %v1517, 0.044715
    %v1522 = vmul.f32 %v1521, %v1517
    %v1523 = vmul.f32 %v1522, %v1517
    %v1524 = vadd.f32 %v1517, %v1523
    %v1525 = vmul.f32 %v1524, 0.7978846
    %v1526 = vtanh.pop %v1525
    %v1527 = vadd.f32 %v1526, 1.0
    %v1528 = vmul.f32 %v1520, %v1527
    %1530 = vrot.lane.b32.xlu0 %v1528, 32
    %v1531 = vpop.permute.xlu0 %1530
    %v1533 = vsel %vm279, %v1433, %v1531
    %s1534 = scalar_lea.vmem [#allocation5], 48
    %1535 = vst [vmem:[%s1534] sm:$0xff] %v1533
    %s1536 = scalar_lea.vmem %s2, 56
    %v1537 = vld [vmem:[%s1536] sm:$0xff]
    %1539 = vrot.lane.b32.xlu0 %v1537, 4
    %v1540 = vpop.permute.xlu0 %1539
    %1543 = vrot.lane.b32.xlu0 %v1433, 12
    %v1544 = vpop.permute.xlu0 %1543
    %v1546 = vsel %vm63, %v39, %v1540
    %v1547 = vsel %vm65, %v1546, %v1544
    %v1548 = vsel %vm67, %v1547, 0.0
    %1549 = vadd.xlane.f32.xlu0 %v1548
    %v1550 = vpop.xlane.xlu0 %1549
    %v1551 = vmul.f32 %v1550, 0.022727273
    %v1552 = vsub.f32 %v1547, %v1551
    %v1553 = vmul.f32 %v1552, %v1552
    %v1554 = vsel %vm67, %v1553, 0.0
    %1555 = vadd.xlane.f32.xlu0 %v1554
    %v1556 = vpop.xlane.xlu0 %1555
    %v1557 = vmul.f32 %v1556, 0.022727273
    %v1558 = vadd.f32 %v1557, 1e-05
    %v1559 = vrsqrt.pop %v1558
    %v1560 = vmul.f32 %v1552, %v1559
    %v1562 = vsel %vm67, %v1560, 0
    %1564 = vmatprep.subr.mxu0 0.0
    %1565 = vmatpush1.msra.mxu0 %v40
    %1566 = vmatprep.subr.mxu0 0.0
    %1567 = vmatpush1.msra.mxu0 %v41
    %1568 = vmatprep.subr.mxu0 0.0
    %1569 = vmatpush1.msra.mxu0 %v42
    %1570 = vmatprep.subr.mxu0 0.0
    %1571 = vmatpush1.msra.mxu0 %v43
    %1572 = vmatprep.subr.mxu0 0.0
    %1573 = vmatpush1.msra.mxu0 %v44
    %1574 = vmatprep.subr.mxu0 0.0
    %1575 = vmatpush1.msra.mxu0 %v92
    %1576 = vmatprep.subr.mxu0 0.0
    %1577 = vmatpush1.msra.mxu0 0.0
    %1578 = vmatprep.subr.mxu0 0.0
    %1579 = vmatpush1.msra.mxu0 0.0
    %1580 = vmatprep.subr.mxu0 0.0
    %1581 = vmatpush1.msra.mxu0 0.0
    %1582 = vmatprep.subr.mxu0 0.0
    %1583 = vmatpush1.msra.mxu0 0.0
    %1584 = vmatprep.subr.mxu0 0.0
    %1585 = vmatpush1.msra.mxu0 0.0
    %1586 = vmatprep.subr.mxu0 0.0
    %1587 = vmatpush1.msra.mxu0 0.0
    %1588 = vmatprep.subr.mxu0 0.0
    %1589 = vmatpush1.msra.mxu0 0.0
    %1590 = vmatprep.subr.mxu0 0.0
    %1591 = vmatpush1.msra.mxu0 0.0
    %1592 = vmatprep.subr.mxu0 0.0
    %1593 = vmatpush1.msra.mxu0 0.0
    %1594 = vmatprep.subr.mxu0 0.0
    %1595 = vmatpush1.msra.mxu0 0.0
    %1596 = vmatprep.subr.mxu0 0.0
    %1597 = vmatpush1.msra.mxu0 0.0
    %1598 = vmatprep.subr.mxu0 0.0
    %1599 = vmatpush1.msra.mxu0 0.0
    %1600 = vmatprep.subr.mxu0 0.0
    %1601 = vmatpush1.msra.mxu0 0.0
    %1602 = vmatprep.subr.mxu0 0.0
    %1603 = vmatpush1.msra.mxu0 0.0
    %1604 = vmatprep.subr.mxu0 0.0
    %1605 = vmatpush1.msra.mxu0 0.0
    %1606 = vmatprep.subr.mxu0 0.0
    %1607 = vmatpush1.msra.mxu0 0.0
    %1608 = vmatprep.subr.mxu0 0.0
    %1609 = vmatpush1.msra.mxu0 0.0
    %1610 = vmatprep.subr.mxu0 0.0
    %1611 = vmatpush1.msra.mxu0 0.0
    %1612 = vmatprep.subr.mxu0 0.0
    %1613 = vmatpush1.msra.mxu0 0.0
    %1614 = vmatprep.subr.mxu0 0.0
    %1615 = vmatpush1.msra.mxu0 0.0
    %1616 = vmatprep.subr.mxu0 0.0
    %1617 = vmatpush1.msra.mxu0 0.0
    %1618 = vmatprep.subr.mxu0 0.0
    %1619 = vmatpush1.msra.mxu0 0.0
    %1620 = vmatprep.subr.mxu0 0.0
    %1621 = vmatpush1.msra.mxu0 0.0
    %1622 = vmatprep.subr.mxu0 0.0
    %1623 = vmatpush1.msra.mxu0 0.0
    %1624 = vmatprep.subr.mxu0 0.0
    %1625 = vmatpush1.msra.mxu0 0.0
    %1626 = vmatprep.subr.mxu0 0.0
    %1627 = vmatpush1.msra.mxu0 0.0
    %1628 = vmatprep.mubr.f32.mxu0 0.0
    %1629 = vmatmul.mubr.f32.gmra.mrb[0].mxu0 %v1562
    %v1630 = vpop.f32.mrb[0].mxu0
    %v1631 = vadd.f32 %v85, %v1630
    %v1632 = vpop.f32.mrb[0].mxu0
    %1633 = vdwg.mxu0
    %v1634 = vmul.f32 %v1631, 0.5
    %v1635 = vmul.f32 %v1631, 0.044715
    %v1636 = vmul.f32 %v1635, %v1631
    %v1637 = vmul.f32 %v1636, %v1631
    %v1638 = vadd.f32 %v1631, %v1637
    %v1639 = vmul.f32 %v1638, 0.7978846
    %v1640 = vtanh.pop %v1639
    %v1641 = vadd.f32 %v1640, 1.0
    %v1642 = vmul.f32 %v1634, %v1641
    %v1643 = vsel %vm173, %v1642, 0.0
    %1644 = vadd.xlane.f32.xlu0 %v1643
    %v1645 = vpop.xlane.xlu0 %1644
    %v1646 = vmul.f32 %v1645, 0.025
    %v1647 = vsub.f32 %v1642, %v1646
    %v1648 = vmul.f32 %v1647, %v1647
    %v1649 = vsel %vm173, %v1648, 0.0
    %1650 = vadd.xlane.f32.xlu0 %v1649
    %v1651 = vpop.xlane.xlu0 %1650
    %v1652 = vmul.f32 %v1651, 0.025
    %v1653 = vadd.f32 %v1652, 1e-05
    %v1654 = vrsqrt.pop %v1653
    %v1655 = vmul.f32 %v1647, %v1654
    %v1657 = vsel %vm173, %v1655, 0
    %1659 = vmatprep.subr.mxu0 0.0
    %1660 = vmatpush1.msra.mxu0 %v47
    %1661 = vmatprep.subr.mxu0 0.0
    %1662 = vmatpush1.msra.mxu0 %v48
    %1663 = vmatprep.subr.mxu0 0.0
    %1664 = vmatpush1.msra.mxu0 %v49
    %1665 = vmatprep.subr.mxu0 0.0
    %1666 = vmatpush1.msra.mxu0 %v50
    %1667 = vmatprep.subr.mxu0 0.0
    %1668 = vmatpush1.msra.mxu0 %v51
    %1669 = vmatprep.subr.mxu0 0.0
    %1670 = vmatpush1.msra.mxu0 0.0
    %1671 = vmatprep.subr.mxu0 0.0
    %1672 = vmatpush1.msra.mxu0 0.0
    %1673 = vmatprep.subr.mxu0 0.0
    %1674 = vmatpush1.msra.mxu0 0.0
    %1675 = vmatprep.subr.mxu0 0.0
    %1676 = vmatpush1.msra.mxu0 0.0
    %1677 = vmatprep.subr.mxu0 0.0
    %1678 = vmatpush1.msra.mxu0 0.0
    %1679 = vmatprep.subr.mxu0 0.0
    %1680 = vmatpush1.msra.mxu0 0.0
    %1681 = vmatprep.subr.mxu0 0.0
    %1682 = vmatpush1.msra.mxu0 0.0
    %1683 = vmatprep.subr.mxu0 0.0
    %1684 = vmatpush1.msra.mxu0 0.0
    %1685 = vmatprep.subr.mxu0 0.0
    %1686 = vmatpush1.msra.mxu0 0.0
    %1687 = vmatprep.subr.mxu0 0.0
    %1688 = vmatpush1.msra.mxu0 0.0
    %1689 = vmatprep.subr.mxu0 0.0
    %1690 = vmatpush1.msra.mxu0 0.0
    %1691 = vmatprep.subr.mxu0 0.0
    %1692 = vmatpush1.msra.mxu0 0.0
    %1693 = vmatprep.subr.mxu0 0.0
    %1694 = vmatpush1.msra.mxu0 0.0
    %1695 = vmatprep.subr.mxu0 0.0
    %1696 = vmatpush1.msra.mxu0 0.0
    %1697 = vmatprep.subr.mxu0 0.0
    %1698 = vmatpush1.msra.mxu0 0.0
    %1699 = vmatprep.subr.mxu0 0.0
    %1700 = vmatpush1.msra.mxu0 0.0
    %1701 = vmatprep.subr.mxu0 0.0
    %1702 = vmatpush1.msra.mxu0 0.0
    %1703 = vmatprep.subr.mxu0 0.0
    %1704 = vmatpush1.msra.mxu0 0.0
    %1705 = vmatprep.subr.mxu0 0.0
    %1706 = vmatpush1.msra.mxu0 0.0
    %1707 = vmatprep.subr.mxu0 0.0
    %1708 = vmatpush1.msra.mxu0 0.0
    %1709 = vmatprep.subr.mxu0 0.0
    %1710 = vmatpush1.msra.mxu0 0.0
    %1711 = vmatprep.subr.mxu0 0.0
    %1712 = vmatpush1.msra.mxu0 0.0
    %1713 = vmatprep.subr.mxu0 0.0
    %1714 = vmatpush1.msra.mxu0 0.0
    %1715 = vmatprep.subr.mxu0 0.0
    %1716 = vmatpush1.msra.mxu0 0.0
    %1717 = vmatprep.subr.mxu0 0.0
    %1718 = vmatpush1.msra.mxu0 0.0
    %1719 = vmatprep.subr.mxu0 0.0
    %1720 = vmatpush1.msra.mxu0 0.0
    %1721 = vmatprep.subr.mxu0 0.0
    %1722 = vmatpush1.msra.mxu0 0.0
    %1723 = vmatprep.mubr.f32.mxu0 0.0
    %1724 = vmatmul.mubr.f32.gmra.mrb[0].mxu0 %v1657
    %v1725 = vpop.f32.mrb[0].mxu0
    %v1726 = vadd.f32 %v191, %v1725
    %v1727 = vpop.f32.mrb[0].mxu0
    %1728 = vdwg.mxu0
    %v1729 = vmul.f32 %v1726, 0.5
    %v1730 = vmul.f32 %v1726, 0.044715
    %v1731 = vmul.f32 %v1730, %v1726
    %v1732 = vmul.f32 %v1731, %v1726
    %v1733 = vadd.f32 %v1726, %v1732
    %v1734 = vmul.f32 %v1733, 0.7978846
    %v1735 = vtanh.pop %v1734
    %v1736 = vadd.f32 %v1735, 1.0
    %v1737 = vmul.f32 %v1729, %v1736
    %1739 = vrot.lane.b32.xlu0 %v1737, 32
    %v1740 = vpop.permute.xlu0 %1739
    %v1742 = vsel %vm279, %v1642, %v1740
    %s1743 = scalar_lea.vmem [#allocation5], 56
    %1744 = vst [vmem:[%s1743] sm:$0xff] %v1742
    // Predicated region
    $region34: #{tpu_custom_call.1} parent=1 // pred_check
      _
    $region35: #{tpu_custom_call.1} parent=1 // pred_check_branch
      %1746 = sbr.rel (0) target = $region37
    $region36: #{tpu_custom_call.1} parent=1 // pred_region
      %s1748 = ssub.s32 1024, 1024
      %1749 = vsyncadd [#allocation4], %s1748
      %s1750 = sshll.u32 [#allocation5], 4
      %s1751 = int_to_ptr.vmem [resolvable:$true] %s1750
      %1756 = dma.vmem_to_hbm [thread:$0]  %s1751, 1024, %s7, [#allocation4], 128, 128, 8
    $region37: #{tpu_custom_call.1} parent=1 // pred_fallthru
      _
    // Predicated region
    $region38: #{tpu_custom_call.1} parent=1 // pred_check
      _
    $region39: #{tpu_custom_call.1} parent=1 // pred_check_branch
      %1758 = sbr.rel (0) target = $region41
    $region40: #{tpu_custom_call.1} parent=1 // pred_region
      %1759 = dma.done [#allocation4], 1024
    $region41: #{tpu_custom_call.1} parent=1 // pred_fallthru
      _
    %1760 = vsyncpa [#allocation3], 1
    %1761 = vsyncpa [#allocation4], 1

</llo_original>
